<compile_context>
chip_gen: v6e
topology: v6e:2x2x1
jax: 0.10.0
libtpu: 0.0.40
codegen_flags: <defaults>
</compile_context>

<pallas_src>
import jax
import jax.numpy as jnp
from jax import lax
from jax.experimental import pallas as pl
from jax.experimental.pallas import tpu as pltpu

_MIB = 1024 * 1024


def _vmem_capacity_bytes():
    """Physical VMEM per TensorCore; falls back to the smallest (v7x: 64 MiB)."""
    try:
        return int(pltpu.get_tpu_info().vmem_capacity_bytes)
    except Exception:  # info not available -> be conservative
        return 64 * _MIB


# ----------------------------------------------------------------------------
# Resident path: A single-buffered in VMEM, several HBF steps per grid index.
# ----------------------------------------------------------------------------
def _hbf_resident_call(alpha, beta, state, a_mat, b_vec, num_steps,
                       steps_per_block=8):
    dim = state.shape[1]
    spb = int(min(steps_per_block, num_steps))      # steps per grid block
    num_blocks = -(-num_steps // spb)                # ceil div
    padded_steps = num_blocks * spb                  # extra steps are discarded

    a_bytes = 4 * dim * dim
    vmem_cap = _vmem_capacity_bytes()
    vmem_limit = int(min(vmem_cap - 2 * _MIB,
                         max(32 * _MIB, a_bytes + 16 * _MIB)))

    def kernel(alpha_ref, beta_ref, state0_ref, b_ref, a_hbm_ref,
               traj_ref, a_vmem, copy_sem, xs_ref):
        t = pl.program_id(0)
        alpha_s = alpha_ref[0]
        beta_s = beta_ref[0]

        # One-time setup: DMA A into its single VMEM copy, load initial state.
        @pl.when(t == 0)
        def _():
            cp = pltpu.make_async_copy(a_hbm_ref, a_vmem, copy_sem)
            cp.start()
            xs_ref[...] = state0_ref[...]
            cp.wait()

        b_row = b_ref[...]                           # (1, dim)
        xp = xs_ref[0:1, :]                          # x_prev carried across blocks
        xc = xs_ref[1:2, :]                          # x_cur

        # spb HBF steps, statically unrolled; carries live in values/vregs and
        # each step writes one dense row of this grid block's (spb, dim) output.
        for i in range(spb):
            # grad(x) = A @ x - b, as a row vector contracted against A's
            # second dim (A is read exactly as stored; no transpose anywhere).
            grad = lax.dot_general(
                xc, a_vmem[...],
                dimension_numbers=(((1,), (1,)), ((), ())),
                preferred_element_type=jnp.float32) - b_row
            xn = xc - alpha_s * grad + beta_s * (xc - xp)
            traj_ref[i:i + 1, :] = xn
            xp, xc = xc, xn                          # update_state()

        xs_ref[0:1, :] = xp                          # carry to next grid block
        xs_ref[1:2, :] = xc

    traj = pl.pallas_call(
        kernel,
        out_shape=jax.ShapeDtypeStruct((padded_steps, dim), jnp.float32),
        grid=(num_blocks,),
        in_specs=[
            pl.BlockSpec(memory_space=pltpu.SMEM),          # alpha (1,)
            pl.BlockSpec(memory_space=pltpu.SMEM),          # beta  (1,)
            pl.BlockSpec((2, dim), lambda t: (0, 0)),       # initial state
            pl.BlockSpec((1, dim), lambda t: (0, 0)),       # b
            pl.BlockSpec(memory_space=pl.ANY),              # A stays in HBM
        ],
        out_specs=pl.BlockSpec((spb, dim), lambda t: (t, 0)),   # dense traj block
        scratch_shapes=[
            pltpu.VMEM((dim, dim), jnp.float32),            # resident A (1 copy)
            pltpu.SemaphoreType.DMA,                        # its one-shot DMA sem
            pltpu.VMEM((2, dim), jnp.float32),              # carried [x_prev; x_cur]
        ],
        compiler_params=pltpu.CompilerParams(
            dimension_semantics=("arbitrary",),             # steps are sequential
            vmem_limit_bytes=vmem_limit),
        cost_estimate=pl.CostEstimate(
            flops=int(2 * dim * dim * padded_steps),
            transcendentals=0,
            bytes_accessed=int(4 * (dim * dim + 3 * dim + padded_steps * dim))),
    )(alpha, beta, state, b_vec, a_mat)
    return traj[:num_steps]


# ----------------------------------------------------------------------------
# Fallback path: A streamed in (tn, dim) row blocks (A does not fit VMEM).
# ----------------------------------------------------------------------------
def _hbf_streamed_kernel(alpha_ref, beta_ref, state_ref, state_blk_ref,
                         a_ref, b_ref, out_ref):
    alpha = alpha_ref[0]
    beta = beta_ref[0]
    x_cur = state_ref[1:2, :]              # full current iterate (matvec input)
    x_prev_blk = state_blk_ref[0:1, :]     # this column block of x_prev
    x_cur_blk = state_blk_ref[1:2, :]      # this column block of x_cur

    grad_blk = lax.dot_general(
        x_cur, a_ref[...],
        dimension_numbers=(((1,), (1,)), ((), ())),
        preferred_element_type=jnp.float32) - b_ref[...]

    out_ref[...] = x_cur_blk - alpha * grad_blk + beta * (x_cur_blk - x_prev_blk)


def _pick_stream_tile(dim, max_block_bytes):
    """Largest multiple-of-128 divisor of dim whose (tn, dim) f32 block fits."""
    best = None
    tn = 128
    while tn <= dim:
        if dim % tn == 0 and tn * dim * 4 <= max_block_bytes:
            best = tn
        tn += 128
    return best


def _hbf_streamed_call(alpha, beta, state, a_mat, b_vec, num_steps,
                       block_cols=None, max_block_bytes=12 * _MIB):
    dim = state.shape[1]
    tn = block_cols if block_cols is not None else _pick_stream_tile(
        dim, max_block_bytes)
    if tn is None or dim % tn != 0:
        raise ValueError(
            "streamed HBF path requires dim to be a multiple of 128 "
            f"(got dim={dim}, block_cols={tn})")
    num_j = dim // tn

    vmem_cap = _vmem_capacity_bytes()
    block_bytes = tn * dim * 4
    vmem_limit = int(min(vmem_cap - 2 * _MIB, max(32 * _MIB, 3 * block_bytes)))

    step = pl.pallas_call(
        _hbf_streamed_kernel,
        out_shape=jax.ShapeDtypeStruct((1, dim), jnp.float32),
        grid=(num_j,),
        in_specs=[
            pl.BlockSpec(memory_space=pltpu.SMEM),            # alpha (1,)
            pl.BlockSpec(memory_space=pltpu.SMEM),            # beta  (1,)
            pl.BlockSpec((2, dim), lambda j: (0, 0)),         # full state (resident)
            pl.BlockSpec((2, tn), lambda j: (0, j)),          # column block of state
            pl.BlockSpec((tn, dim), lambda j: (j, 0)),        # A row-block (streamed)
            pl.BlockSpec((1, tn), lambda j: (0, j)),          # b block
        ],
        out_specs=pl.BlockSpec((1, tn), lambda j: (0, j)),
        compiler_params=pltpu.CompilerParams(
            dimension_semantics=("parallel",),                # megacore-shardable
            vmem_limit_bytes=vmem_limit),
        cost_estimate=pl.CostEstimate(
            flops=int(2 * dim * dim),
            transcendentals=0,
            bytes_accessed=int(4 * (dim * dim + 5 * dim))),
    )

    # Steps stay as separate calls chained with scan so the independent j axis
    # keeps "parallel" semantics (2x on v7x megacore); see header comment.
    def one_step(carry, _):
        st = carry
        x_new = step(alpha, beta, st, st, a_mat, b_vec)        # (1, dim)
        new_st = jnp.concatenate([st[1:2, :], x_new], axis=0)  # update_state()
        return new_st, x_new

    _, traj = lax.scan(one_step, state, None, length=num_steps)
    return traj.reshape(num_steps, dim)


# ----------------------------------------------------------------------------
# Public wrappers
# ----------------------------------------------------------------------------
def hbf_run(alpha, beta, state, a_mat, b_vec, num_steps=1, *,
            max_resident_bytes=None, stream_block_cols=None,
            force_streamed=False):
    """Run `num_steps` chained HBF updates; returns the trajectory (num_steps, dim).

    alpha, beta : (1,) f32 scalars; state : (2, dim) = [x_prev; x_cur];
    a_mat : (dim, dim), assumed symmetric (grad = A@x - b); b_vec : (1, dim).
    """
    dim = state.shape[1]
    a_bytes = 4 * dim * dim
    if max_resident_bytes is None:
        # A is single-buffered in the resident path; leave ~16 MiB of headroom
        # for the output double-buffer / small operands / compiler scratch.
        max_resident_bytes = _vmem_capacity_bytes() - 16 * _MIB
    if (not force_streamed) and a_bytes <= max_resident_bytes:
        return _hbf_resident_call(alpha, beta, state, a_mat, b_vec, num_steps)
    return _hbf_streamed_call(alpha, beta, state, a_mat, b_vec, num_steps,
                              block_cols=stream_block_cols)


def hbf_step(alpha, beta, state, a_mat, b_vec):
    """Single HBF update (== the PyTorch module's forward). Returns (1, dim)."""
    return hbf_run(alpha, beta, state, a_mat, b_vec, num_steps=1)


if __name__ == "__main__":
    DIM = 256
    NUM_STEPS = 10   # > 8 so the resident path carries state across grid blocks

    key = jax.random.PRNGKey(0)
    k_w, k_b, k_prev, k_cur = jax.random.split(key, 4)

    # SPD quadratic so the HBF iteration is well behaved (and A is symmetric,
    # matching the specialized gradient A @ x - b).
    w = jax.random.normal(k_w, (DIM, DIM), dtype=jnp.float32)
    a_mat = w @ w.T / DIM + 0.5 * jnp.eye(DIM, dtype=jnp.float32)
    b_vec = jax.random.normal(k_b, (1, DIM), dtype=jnp.float32)
    x_prev = jax.random.normal(k_prev, (1, DIM), dtype=jnp.float32)
    x_cur = jax.random.normal(k_cur, (1, DIM), dtype=jnp.float32)
    state = jnp.concatenate([x_prev, x_cur], axis=0)            # (2, DIM)

    alpha = jnp.array([0.1], dtype=jnp.float32)                 # step size
    beta = jnp.array([0.5], dtype=jnp.float32)                  # momentum

    # pure-JAX reference trajectory (HBF semantics of the PyTorch module)
    def reference(num_steps):
        xp, xc = x_prev, x_cur
        rows = []
        for _ in range(num_steps):
            grad = jnp.dot(xc, a_mat.T,
                           precision=jax.lax.Precision.HIGHEST) - b_vec
            xn = xc - alpha[0] * grad + beta[0] * (xc - xp)
            rows.append(xn)
            xp, xc = xc, xn
        return jnp.concatenate(rows, axis=0)

    ref_traj = reference(NUM_STEPS)

    # Main path: A resident (single-buffered) in VMEM, 8 steps per grid index.
    traj = jax.block_until_ready(
        hbf_run(alpha, beta, state, a_mat, b_vec, num_steps=NUM_STEPS))
    assert traj.shape == (NUM_STEPS, DIM), traj.shape
    assert jnp.allclose(traj, ref_traj, atol=2e-3, rtol=2e-3)

    # Single forward() equivalent.
    single = jax.block_until_ready(hbf_step(alpha, beta, state, a_mat, b_vec))
    assert single.shape == (1, DIM)
    assert jnp.allclose(single, ref_traj[0:1], atol=2e-3, rtol=2e-3)

    # Fallback path: column-tiled streaming of A (used when A exceeds VMEM).
    traj_stream = jax.block_until_ready(
        hbf_run(alpha, beta, state, a_mat, b_vec, num_steps=3,
                force_streamed=True, stream_block_cols=128))
    assert traj_stream.shape == (3, DIM)
    assert jnp.allclose(traj_stream, ref_traj[:3], atol=2e-3, rtol=2e-3)

    print("KERNEL_OK")
</pallas_src>

<mosaic_0001>
module attributes {stable_mosaic.version = 11 : i64} {
  func.func @kernel(%arg0: i32, %arg1: memref<1xf32, #tpu.memory_space<smem>>, %arg2: memref<1xf32, #tpu.memory_space<smem>>, %arg3: memref<2x256xf32, #tpu.memory_space<vmem>>, %arg4: memref<1x256xf32, #tpu.memory_space<vmem>>, %arg5: memref<256x256xf32, #tpu.memory_space<any>>, %arg6: memref<8x256xf32, #tpu.memory_space<vmem>>, %arg7: memref<256x256xf32, #tpu.memory_space<vmem>>, %arg8: memref<!tpu.dma_semaphore, #tpu.memory_space<semaphore_mem>>, %arg9: memref<2x256xf32, #tpu.memory_space<vmem>>) attributes {dimension_semantics = [#tpu.dimension_semantics<arbitrary>], iteration_bounds = array<i64: 2>, scalar_prefetch = 0 : i64, scratch_operands = 3 : i64, tpu.core_type = #tpu.core_type<tc>, window_params = [{transform_indices = @transform_0, window_bounds = array<i64: 1>}, {transform_indices = @transform_1, window_bounds = array<i64: 1>}, {pipeline_mode = #tpu.pipeline_mode<synchronous>, transform_indices = @transform_2, window_bounds = array<i64: 2, 256>}, {pipeline_mode = #tpu.pipeline_mode<synchronous>, transform_indices = @transform_3, window_bounds = array<i64: 1, 256>}, {}, {transform_indices = @transform_5, window_bounds = array<i64: 8, 256>}]} {
    %c0 = arith.constant 0 : index
    %0 = memref.load %arg1[%c0] : memref<1xf32, #tpu.memory_space<smem>>
    %c0_0 = arith.constant 0 : index
    %1 = memref.load %arg2[%c0_0] : memref<1xf32, #tpu.memory_space<smem>>
    %c0_i32 = arith.constant 0 : i32
    %2 = arith.cmpi eq, %arg0, %c0_i32 : i32
    %3 = arith.extui %2 : i1 to i32
    %c0_i32_1 = arith.constant 0 : i32
    %4 = arith.cmpi ne, %3, %c0_i32_1 : i32
    scf.if %4 {
      tpu.enqueue_dma source(%arg5 : memref<256x256xf32, #tpu.memory_space<any>>) target(%arg7 : memref<256x256xf32, #tpu.memory_space<vmem>>) target_semaphore(%arg8 : memref<!tpu.dma_semaphore, #tpu.memory_space<semaphore_mem>>)
      %c0_44 = arith.constant 0 : index
      %c0_45 = arith.constant 0 : index
      %98 = vector.load %arg3[%c0_44, %c0_45] : memref<2x256xf32, #tpu.memory_space<vmem>>, vector<2x256xf32>
      %c0_46 = arith.constant 0 : index
      %c0_47 = arith.constant 0 : index
      %99 = vector.load %arg9[%c0_46, %c0_47] : memref<2x256xf32, #tpu.memory_space<vmem>>, vector<2x256xf32>
      tpu.vector_store %arg9[%c0_46, %c0_47], %98 {strides = array<i32>} : memref<2x256xf32, #tpu.memory_space<vmem>>, vector<2x256xf32>,
      tpu.wait_dma2 semaphore(%arg8 : memref<!tpu.dma_semaphore, #tpu.memory_space<semaphore_mem>>) src(%arg5 : memref<256x256xf32, #tpu.memory_space<any>>) dst(%arg7 : memref<256x256xf32, #tpu.memory_space<vmem>>)
    } else {
    }
    %c0_2 = arith.constant 0 : index
    %c0_3 = arith.constant 0 : index
    %5 = vector.load %arg4[%c0_2, %c0_3] : memref<1x256xf32, #tpu.memory_space<vmem>>, vector<1x256xf32>
    %c0_4 = arith.constant 0 : index
    %c0_5 = arith.constant 0 : index
    %6 = vector.load %arg9[%c0_4, %c0_5] : memref<2x256xf32, #tpu.memory_space<vmem>>, vector<1x256xf32>
    %c1 = arith.constant 1 : index
    %c0_6 = arith.constant 0 : index
    %7 = vector.load %arg9[%c1, %c0_6] : memref<2x256xf32, #tpu.memory_space<vmem>>, vector<1x256xf32>
    %c0_7 = arith.constant 0 : index
    %c0_8 = arith.constant 0 : index
    %8 = vector.load %arg7[%c0_7, %c0_8] : memref<256x256xf32, #tpu.memory_space<vmem>>, vector<256x256xf32>
    %cst = arith.constant dense<0.000000e+00> : vector<1x256xf32>
    %9 = tpu.matmul %7, %8, %cst {dimension_numbers = #tpu.dot_dimension_numbers<[1], [1], [0], [0], [0, 0, 1, 0], [], []>} : vector<1x256xf32>, vector<256x256xf32>, vector<1x256xf32> -> vector<1x256xf32>
    %10 = arith.subf %9, %5 : vector<1x256xf32>
    %11 = vector.broadcast %0 : f32 to vector<1x256xf32>
    %12 = arith.mulf %11, %10 : vector<1x256xf32>
    %13 = arith.subf %7, %12 : vector<1x256xf32>
    %14 = arith.subf %7, %6 : vector<1x256xf32>
    %15 = vector.broadcast %1 : f32 to vector<1x256xf32>
    %16 = arith.mulf %15, %14 : vector<1x256xf32>
    %17 = arith.addf %13, %16 : vector<1x256xf32>
    %c0_9 = arith.constant 0 : index
    %c0_10 = arith.constant 0 : index
    %18 = vector.load %arg6[%c0_9, %c0_10] : memref<8x256xf32, #tpu.memory_space<vmem>>, vector<1x256xf32>
    tpu.vector_store %arg6[%c0_9, %c0_10], %17 {strides = array<i32>} : memref<8x256xf32, #tpu.memory_space<vmem>>, vector<1x256xf32>,
    %c0_11 = arith.constant 0 : index
    %c0_12 = arith.constant 0 : index
    %19 = vector.load %arg7[%c0_11, %c0_12] : memref<256x256xf32, #tpu.memory_space<vmem>>, vector<256x256xf32>
    %cst_13 = arith.constant dense<0.000000e+00> : vector<1x256xf32>
    %20 = tpu.matmul %17, %19, %cst_13 {dimension_numbers = #tpu.dot_dimension_numbers<[1], [1], [0], [0], [0, 0, 1, 0], [], []>} : vector<1x256xf32>, vector<256x256xf32>, vector<1x256xf32> -> vector<1x256xf32>
    %21 = arith.subf %20, %5 : vector<1x256xf32>
    %22 = vector.broadcast %0 : f32 to vector<1x256xf32>
    %23 = arith.mulf %22, %21 : vector<1x256xf32>
    %24 = arith.subf %17, %23 : vector<1x256xf32>
    %25 = arith.subf %17, %7 : vector<1x256xf32>
    %26 = vector.broadcast %1 : f32 to vector<1x256xf32>
    %27 = arith.mulf %26, %25 : vector<1x256xf32>
    %28 = arith.addf %24, %27 : vector<1x256xf32>
    %c1_14 = arith.constant 1 : index
    %c0_15 = arith.constant 0 : index
    %29 = vector.load %arg6[%c1_14, %c0_15] : memref<8x256xf32, #tpu.memory_space<vmem>>, vector<1x256xf32>
    tpu.vector_store %arg6[%c1_14, %c0_15], %28 {strides = array<i32>} : memref<8x256xf32, #tpu.memory_space<vmem>>, vector<1x256xf32>,
    %c0_16 = arith.constant 0 : index
    %c0_17 = arith.constant 0 : index
    %30 = vector.load %arg7[%c0_16, %c0_17] : memref<256x256xf32, #tpu.memory_space<vmem>>, vector<256x256xf32>
    %cst_18 = arith.constant dense<0.000000e+00> : vector<1x256xf32>
    %31 = tpu.matmul %28, %30, %cst_18 {dimension_numbers = #tpu.dot_dimension_numbers<[1], [1], [0], [0], [0, 0, 1, 0], [], []>} : vector<1x256xf32>, vector<256x256xf32>, vector<1x256xf32> -> vector<1x256xf32>
    %32 = arith.subf %31, %5 : vector<1x256xf32>
    %33 = vector.broadcast %0 : f32 to vector<1x256xf32>
    %34 = arith.mulf %33, %32 : vector<1x256xf32>
    %35 = arith.subf %28, %34 : vector<1x256xf32>
    %36 = arith.subf %28, %17 : vector<1x256xf32>
    %37 = vector.broadcast %1 : f32 to vector<1x256xf32>
    %38 = arith.mulf %37, %36 : vector<1x256xf32>
    %39 = arith.addf %35, %38 : vector<1x256xf32>
    %c2 = arith.constant 2 : index
    %c0_19 = arith.constant 0 : index
    %40 = vector.load %arg6[%c2, %c0_19] : memref<8x256xf32, #tpu.memory_space<vmem>>, vector<1x256xf32>
    tpu.vector_store %arg6[%c2, %c0_19], %39 {strides = array<i32>} : memref<8x256xf32, #tpu.memory_space<vmem>>, vector<1x256xf32>,
    %c0_20 = arith.constant 0 : index
    %c0_21 = arith.constant 0 : index
    %41 = vector.load %arg7[%c0_20, %c0_21] : memref<256x256xf32, #tpu.memory_space<vmem>>, vector<256x256xf32>
    %cst_22 = arith.constant dense<0.000000e+00> : vector<1x256xf32>
    %42 = tpu.matmul %39, %41, %cst_22 {dimension_numbers = #tpu.dot_dimension_numbers<[1], [1], [0], [0], [0, 0, 1, 0], [], []>} : vector<1x256xf32>, vector<256x256xf32>, vector<1x256xf32> -> vector<1x256xf32>
    %43 = arith.subf %42, %5 : vector<1x256xf32>
    %44 = vector.broadcast %0 : f32 to vector<1x256xf32>
    %45 = arith.mulf %44, %43 : vector<1x256xf32>
    %46 = arith.subf %39, %45 : vector<1x256xf32>
    %47 = arith.subf %39, %28 : vector<1x256xf32>
    %48 = vector.broadcast %1 : f32 to vector<1x256xf32>
    %49 = arith.mulf %48, %47 : vector<1x256xf32>
    %50 = arith.addf %46, %49 : vector<1x256xf32>
    %c3 = arith.constant 3 : index
    %c0_23 = arith.constant 0 : index
    %51 = vector.load %arg6[%c3, %c0_23] : memref<8x256xf32, #tpu.memory_space<vmem>>, vector<1x256xf32>
    tpu.vector_store %arg6[%c3, %c0_23], %50 {strides = array<i32>} : memref<8x256xf32, #tpu.memory_space<vmem>>, vector<1x256xf32>,
    %c0_24 = arith.constant 0 : index
    %c0_25 = arith.constant 0 : index
    %52 = vector.load %arg7[%c0_24, %c0_25] : memref<256x256xf32, #tpu.memory_space<vmem>>, vector<256x256xf32>
    %cst_26 = arith.constant dense<0.000000e+00> : vector<1x256xf32>
    %53 = tpu.matmul %50, %52, %cst_26 {dimension_numbers = #tpu.dot_dimension_numbers<[1], [1], [0], [0], [0, 0, 1, 0], [], []>} : vector<1x256xf32>, vector<256x256xf32>, vector<1x256xf32> -> vector<1x256xf32>
    %54 = arith.subf %53, %5 : vector<1x256xf32>
    %55 = vector.broadcast %0 : f32 to vector<1x256xf32>
    %56 = arith.mulf %55, %54 : vector<1x256xf32>
    %57 = arith.subf %50, %56 : vector<1x256xf32>
    %58 = arith.subf %50, %39 : vector<1x256xf32>
    %59 = vector.broadcast %1 : f32 to vector<1x256xf32>
    %60 = arith.mulf %59, %58 : vector<1x256xf32>
    %61 = arith.addf %57, %60 : vector<1x256xf32>
    %c4 = arith.constant 4 : index
    %c0_27 = arith.constant 0 : index
    %62 = vector.load %arg6[%c4, %c0_27] : memref<8x256xf32, #tpu.memory_space<vmem>>, vector<1x256xf32>
    tpu.vector_store %arg6[%c4, %c0_27], %61 {strides = array<i32>} : memref<8x256xf32, #tpu.memory_space<vmem>>, vector<1x256xf32>,
    %c0_28 = arith.constant 0 : index
    %c0_29 = arith.constant 0 : index
    %63 = vector.load %arg7[%c0_28, %c0_29] : memref<256x256xf32, #tpu.memory_space<vmem>>, vector<256x256xf32>
    %cst_30 = arith.constant dense<0.000000e+00> : vector<1x256xf32>
    %64 = tpu.matmul %61, %63, %cst_30 {dimension_numbers = #tpu.dot_dimension_numbers<[1], [1], [0], [0], [0, 0, 1, 0], [], []>} : vector<1x256xf32>, vector<256x256xf32>, vector<1x256xf32> -> vector<1x256xf32>
    %65 = arith.subf %64, %5 : vector<1x256xf32>
    %66 = vector.broadcast %0 : f32 to vector<1x256xf32>
    %67 = arith.mulf %66, %65 : vector<1x256xf32>
    %68 = arith.subf %61, %67 : vector<1x256xf32>
    %69 = arith.subf %61, %50 : vector<1x256xf32>
    %70 = vector.broadcast %1 : f32 to vector<1x256xf32>
    %71 = arith.mulf %70, %69 : vector<1x256xf32>
    %72 = arith.addf %68, %71 : vector<1x256xf32>
    %c5 = arith.constant 5 : index
    %c0_31 = arith.constant 0 : index
    %73 = vector.load %arg6[%c5, %c0_31] : memref<8x256xf32, #tpu.memory_space<vmem>>, vector<1x256xf32>
    tpu.vector_store %arg6[%c5, %c0_31], %72 {strides = array<i32>} : memref<8x256xf32, #tpu.memory_space<vmem>>, vector<1x256xf32>,
    %c0_32 = arith.constant 0 : index
    %c0_33 = arith.constant 0 : index
    %74 = vector.load %arg7[%c0_32, %c0_33] : memref<256x256xf32, #tpu.memory_space<vmem>>, vector<256x256xf32>
    %cst_34 = arith.constant dense<0.000000e+00> : vector<1x256xf32>
    %75 = tpu.matmul %72, %74, %cst_34 {dimension_numbers = #tpu.dot_dimension_numbers<[1], [1], [0], [0], [0, 0, 1, 0], [], []>} : vector<1x256xf32>, vector<256x256xf32>, vector<1x256xf32> -> vector<1x256xf32>
    %76 = arith.subf %75, %5 : vector<1x256xf32>
    %77 = vector.broadcast %0 : f32 to vector<1x256xf32>
    %78 = arith.mulf %77, %76 : vector<1x256xf32>
    %79 = arith.subf %72, %78 : vector<1x256xf32>
    %80 = arith.subf %72, %61 : vector<1x256xf32>
    %81 = vector.broadcast %1 : f32 to vector<1x256xf32>
    %82 = arith.mulf %81, %80 : vector<1x256xf32>
    %83 = arith.addf %79, %82 : vector<1x256xf32>
    %c6 = arith.constant 6 : index
    %c0_35 = arith.constant 0 : index
    %84 = vector.load %arg6[%c6, %c0_35] : memref<8x256xf32, #tpu.memory_space<vmem>>, vector<1x256xf32>
    tpu.vector_store %arg6[%c6, %c0_35], %83 {strides = array<i32>} : memref<8x256xf32, #tpu.memory_space<vmem>>, vector<1x256xf32>,
    %c0_36 = arith.constant 0 : index
    %c0_37 = arith.constant 0 : index
    %85 = vector.load %arg7[%c0_36, %c0_37] : memref<256x256xf32, #tpu.memory_space<vmem>>, vector<256x256xf32>
    %cst_38 = arith.constant dense<0.000000e+00> : vector<1x256xf32>
    %86 = tpu.matmul %83, %85, %cst_38 {dimension_numbers = #tpu.dot_dimension_numbers<[1], [1], [0], [0], [0, 0, 1, 0], [], []>} : vector<1x256xf32>, vector<256x256xf32>, vector<1x256xf32> -> vector<1x256xf32>
    %87 = arith.subf %86, %5 : vector<1x256xf32>
    %88 = vector.broadcast %0 : f32 to vector<1x256xf32>
    %89 = arith.mulf %88, %87 : vector<1x256xf32>
    %90 = arith.subf %83, %89 : vector<1x256xf32>
    %91 = arith.subf %83, %72 : vector<1x256xf32>
    %92 = vector.broadcast %1 : f32 to vector<1x256xf32>
    %93 = arith.mulf %92, %91 : vector<1x256xf32>
    %94 = arith.addf %90, %93 : vector<1x256xf32>
    %c7 = arith.constant 7 : index
    %c0_39 = arith.constant 0 : index
    %95 = vector.load %arg6[%c7, %c0_39] : memref<8x256xf32, #tpu.memory_space<vmem>>, vector<1x256xf32>
    tpu.vector_store %arg6[%c7, %c0_39], %94 {strides = array<i32>} : memref<8x256xf32, #tpu.memory_space<vmem>>, vector<1x256xf32>,
    %c0_40 = arith.constant 0 : index
    %c0_41 = arith.constant 0 : index
    %96 = vector.load %arg9[%c0_40, %c0_41] : memref<2x256xf32, #tpu.memory_space<vmem>>, vector<1x256xf32>
    tpu.vector_store %arg9[%c0_40, %c0_41], %83 {strides = array<i32>} : memref<2x256xf32, #tpu.memory_space<vmem>>, vector<1x256xf32>,
    %c1_42 = arith.constant 1 : index
    %c0_43 = arith.constant 0 : index
    %97 = vector.load %arg9[%c1_42, %c0_43] : memref<2x256xf32, #tpu.memory_space<vmem>>, vector<1x256xf32>
    tpu.vector_store %arg9[%c1_42, %c0_43], %94 {strides = array<i32>} : memref<2x256xf32, #tpu.memory_space<vmem>>, vector<1x256xf32>,
    return
  }
  func.func @transform_0(%arg0: i32) -> i32 {
    %c0_i32 = arith.constant 0 : i32
    %c0_i32_0 = arith.constant 0 : i32
    return %c0_i32 : i32
  }
  func.func @transform_1(%arg0: i32) -> i32 {
    %c0_i32 = arith.constant 0 : i32
    %c0_i32_0 = arith.constant 0 : i32
    return %c0_i32 : i32
  }
  func.func @transform_2(%arg0: i32) -> (i32, i32) {
    %c0_i32 = arith.constant 0 : i32
    %c0_i32_0 = arith.constant 0 : i32
    %c0_i32_1 = arith.constant 0 : i32
    return %c0_i32, %c0_i32_0 : i32, i32
  }
  func.func @transform_3(%arg0: i32) -> (i32, i32) {
    %c0_i32 = arith.constant 0 : i32
    %c0_i32_0 = arith.constant 0 : i32
    %c0_i32_1 = arith.constant 0 : i32
    return %c0_i32, %c0_i32_0 : i32, i32
  }
  func.func @transform_5(%arg0: i32) -> (i32, i32) {
    %c0_i32 = arith.constant 0 : i32
    %c0_i32_0 = arith.constant 0 : i32
    return %arg0, %c0_i32 : i32, i32
  }
}

</mosaic_0001>

<llo_original>
// kernel: tpu_custom_call.1
$region0: #{tpu_custom_call.1}
  #allocation0 [shape = 'u32[]', space=smem, size = 0x4, offset = 0x4, fixed_abs, tag = 'smem constant byte address 0x4 - core index']
  #allocation1 [shape = 'u32[144,128]{1,0:T(1,128)}', space=vmem, size = 0x12000, scoped, tag = 'internal scratch']
  #allocation2 [shape = 'f32[256,256]{1,0:T(8,128)}', space=vmem, size = 0x40000, scoped, tag = 'scratch operand']
  #allocation3 [shape = 's32[1]{0}', space=sflag, size = 0x4, scoped, tag = 'scratch operand']
  #allocation4 [shape = 'f32[2,256]{1,0:T(2,128)}', space=vmem, size = 0x800, scoped, tag = 'scratch operand']
  #allocation5 [shape = 'f32[1]{0:T(128)S(6)}', space=smem, size = 0x200, scoped, tag = 'scoped memory for tpu_custom_call.1']
  #allocation6 [shape = 'f32[1]{0:T(128)S(6)}', space=smem, size = 0x200, scoped, tag = 'scoped memory for tpu_custom_call.1']
  #allocation11 [shape = 's32[]', space=sflag, size = 0x4, offset = 0, fixed_abs, tag = 'sflag constant byte address 0x0 - dummy sync flag']
  #allocation12 [shape = 's32[]', space=sflag, size = 0x4, offset = 0, fixed_abs, tag = 'sflag constant byte address 0x0 - dummy sync flag']
  #allocation13 [shape = 'u32[]', space=smem, size = 0x4, offset = 0x44, fixed_abs, tag = 'smem constant byte address 0x44 - assertion arg 0']
  #allocation14 [shape = 'u32[]', space=smem, size = 0x4, offset = 0x48, fixed_abs, tag = 'smem constant byte address 0x48 - assertion arg 1']
  %s0 = inlined_call_operand.<no memory space> [shape: f32[1], index: 0, kind: input, shape index: {}]
  %s1 = inlined_call_operand.<no memory space> [shape: f32[1], index: 1, kind: input, shape index: {}]
  %s2 = inlined_call_operand.vmem [shape: f32[2,256], index: 2, kind: input, shape index: {}]
  %s3 = inlined_call_operand.hbm [shape: f32[1,256], index: 3, kind: input, shape index: {}]
  %s4 = inlined_call_operand.hbm [shape: f32[256,256], index: 4, kind: input, shape index: {}]
  %s5 = inlined_call_operand.hbm [shape: f32[16,256], index: 5, kind: output, shape index: {}]
  %s6 = sld [smem:[#allocation0]]
  $region61: #{tpu_custom_call.1} parent=0
    _
  %s8 = ssub.s32 1, %s6
  %s9 = scalar_select 0, %s8, %s6
  %10 = sst [smem:[#allocation5]] %s0
  %11 = sst [smem:[#allocation6]] %s1
  $region1: #{tpu_custom_call.1} parent=0
    #allocation7 [shape = 'u8[1024]{0}', space=vmem, size = 0x400, scoped, tag = 'input window, operand 3, single buffered']
    #allocation8 [shape = 's32[2]{0}', space=sflag, size = 0x8, scoped, tag = 'scoped memory for tpu_custom_call.1']
    #allocation9 [shape = 's32[2]{0}', space=sflag, size = 0x8, scoped, tag = 'scoped memory for tpu_custom_call.1']
    #allocation10 [shape = 'u8[16384]{0}', space=vmem, size = 0x4000, scoped, tag = 'output window, operand 0']
    %12 = vsyncpa [#allocation8], 0
    %13 = vsyncpa [#allocation9], 0
    %s14 = scalar_lea.sflag [#allocation9], 1
    %15 = vsyncpa %s14, 0
    loop: start=0, step=1, limit=4
    $region2: #{tpu_custom_call.1} parent=1 // loop_pre_header
      _
    $region3: #{tpu_custom_call.1} parent=1 // loop_header
      %s17 = sphi 0, %s21
      %p18 = scmp.ge.s32.totalorder %s17, 4
      %s25 = sphi 0, %s25
      %s27 = sphi 0, %s25
      %s28 = sphi 0, %s27
      %s42 = sphi 0, %s28
      %s46 = sphi 0, %s46
      %s48 = sphi 0, %s46
      %s49 = sphi 0, %s48
      %s63 = sphi 0, %s49
      %s67 = sphi 0, %s67
      %s69 = sphi 0, %s67
      %s70 = sphi 0, %s69
      %s84 = sphi 0, %s70
      %s88 = sphi 0, %s88
      %s90 = sphi 0, %s88
      %s91 = sphi 0, %s90
      %s105 = sphi 0, %s91
      %s111 = sphi 0, %s113
      %s114 = sphi 0, %s111
      %s115 = sphi 0, %s114
      %s131 = sphi 0, %s115
    $region4: #{tpu_custom_call.1} parent=1 // loop_header_branch
      %20 = sbr.rel (%p18) target = $region8
    $region5: #{tpu_custom_call.1} parent=1 // loop_body
      %s22 = ssub.s32 %s17, 1
      %s23 = ssub.s32 %s17, 2
      %s24 = sadd.s32 %s17, 1
      %s26 = sadd.s32 %s25, 1
      %p29 = scmp.eq.s32.totalorder %s17, 1
      %p30 = scmp.ne.s32.totalorder %s25, %s27
      %p31 = scmp.eq.s32.totalorder %s17, 0
      %p32 = por %p30, %p31
      %p33 = scmp.ne.s32.totalorder %s25, %s27
      %p34 = scmp.eq.s32.totalorder %s22, 1
      %p35 = por %p33, %p34
      %p36 = scmp.ne.s32.totalorder %s27, %s28
      %p37 = scmp.eq.s32.totalorder %s22, 0
      %p38 = por %p36, %p37
      %p39 = scmp.ne.s32.totalorder %s27, %s28
      %p40 = scmp.eq.s32.totalorder %s23, 1
      %p41 = por %p39, %p40
      %p43 = scmp.ne.s32.totalorder %s28, %s42
      %p44 = scmp.eq.s32.totalorder %s23, 0
      %p45 = por %p43, %p44
      %s47 = sadd.s32 %s46, 1
      %p50 = scmp.eq.s32.totalorder %s17, 1
      %p51 = scmp.ne.s32.totalorder %s46, %s48
      %p52 = scmp.eq.s32.totalorder %s17, 0
      %p53 = por %p51, %p52
      %p54 = scmp.ne.s32.totalorder %s46, %s48
      %p55 = scmp.eq.s32.totalorder %s22, 1
      %p56 = por %p54, %p55
      %p57 = scmp.ne.s32.totalorder %s48, %s49
      %p58 = scmp.eq.s32.totalorder %s22, 0
      %p59 = por %p57, %p58
      %p60 = scmp.ne.s32.totalorder %s48, %s49
      %p61 = scmp.eq.s32.totalorder %s23, 1
      %p62 = por %p60, %p61
      %p64 = scmp.ne.s32.totalorder %s49, %s63
      %p65 = scmp.eq.s32.totalorder %s23, 0
      %p66 = por %p64, %p65
      %s68 = sadd.s32 %s67, 1
      %p71 = scmp.eq.s32.totalorder %s17, 1
      %p72 = scmp.ne.s32.totalorder %s67, %s69
      %p73 = scmp.eq.s32.totalorder %s17, 0
      %p74 = por %p72, %p73
      %p75 = scmp.ne.s32.totalorder %s67, %s69
      %p76 = scmp.eq.s32.totalorder %s22, 1
      %p77 = por %p75, %p76
      %p78 = scmp.ne.s32.totalorder %s69, %s70
      %p79 = scmp.eq.s32.totalorder %s22, 0
      %p80 = por %p78, %p79
      %p81 = scmp.ne.s32.totalorder %s69, %s70
      %p82 = scmp.eq.s32.totalorder %s23, 1
      %p83 = por %p81, %p82
      %p85 = scmp.ne.s32.totalorder %s70, %s84
      %p86 = scmp.eq.s32.totalorder %s23, 0
      %p87 = por %p85, %p86
      %s89 = sadd.s32 %s88, 1
      %p92 = scmp.eq.s32.totalorder %s17, 1
      %p93 = scmp.ne.s32.totalorder %s88, %s90
      %p94 = scmp.eq.s32.totalorder %s17, 0
      %p95 = por %p93, %p94
      %p96 = scmp.ne.s32.totalorder %s88, %s90
      %p97 = scmp.eq.s32.totalorder %s22, 1
      %p98 = por %p96, %p97
      %p99 = scmp.ne.s32.totalorder %s90, %s91
      %p100 = scmp.eq.s32.totalorder %s22, 0
      %p101 = por %p99, %p100
      %p102 = scmp.ne.s32.totalorder %s90, %s91
      %p103 = scmp.eq.s32.totalorder %s23, 1
      %p104 = por %p102, %p103
      %p106 = scmp.ne.s32.totalorder %s91, %s105
      %p107 = scmp.eq.s32.totalorder %s23, 0
      %p108 = por %p106, %p107
      %s109 = ssub.s32 %s17, %s24
      %p110 = scmp.eq.s32.totalorder %s109, 0
      %s112 = sadd.s32 %s111, 1
      %s113 = scalar_select %p110, %s111, %s112
      %p116 = pneg %p110
      %p117 = scmp.eq.s32.totalorder %s17, 1
      %p118 = por %p116, %p117
      %p119 = scmp.ne.s32.totalorder %s111, %s114
      %p120 = scmp.eq.s32.totalorder %s17, 0
      %p121 = por %p119, %p120
      %p122 = scmp.ne.s32.totalorder %s111, %s114
      %p123 = scmp.eq.s32.totalorder %s22, 1
      %p124 = por %p122, %p123
      %p125 = scmp.ne.s32.totalorder %s114, %s115
      %p126 = scmp.eq.s32.totalorder %s22, 0
      %p127 = por %p125, %p126
      %p128 = scmp.ne.s32.totalorder %s114, %s115
      %p129 = scmp.eq.s32.totalorder %s23, 1
      %p130 = por %p128, %p129
      %p132 = scmp.ne.s32.totalorder %s115, %s131
      %p133 = scmp.eq.s32.totalorder %s23, 0
      %p134 = por %p132, %p133
      %p135 = scmp.le.s32.totalorder 1, %s17
      %p136 = scmp.lt.s32.totalorder %s17, 3
      %p137 = pnand %p135, %p136
      %p138 = pneg %p137
      // Predicated region
      $region9: #{tpu_custom_call.1} parent=5 // pred_check
        _
      $region10: #{tpu_custom_call.1} parent=5 // pred_check_branch
        %140 = sbr.rel (%p137) target = $region12
      $region11: #{tpu_custom_call.1} parent=5 // pred_region
        %s141 = ssub.s32 %s17, 1
        // Predicated region
        $region13: #{tpu_custom_call.1} parent=11 // pred_check
          %p142 = pneg %p38
        $region14: #{tpu_custom_call.1} parent=11 // pred_check_branch
          %144 = sbr.rel (%p142) target = $region16
        $region15: #{tpu_custom_call.1} parent=11 // pred_region
          _
        $region16: #{tpu_custom_call.1} parent=11 // pred_fallthru
          _
        // Predicated region
        $region17: #{tpu_custom_call.1} parent=11 // pred_check
          %p145 = pneg %p59
        $region18: #{tpu_custom_call.1} parent=11 // pred_check_branch
          %147 = sbr.rel (%p145) target = $region20
        $region19: #{tpu_custom_call.1} parent=11 // pred_region
          _
        $region20: #{tpu_custom_call.1} parent=11 // pred_fallthru
          _
        // Predicated region
        $region21: #{tpu_custom_call.1} parent=11 // pred_check
          %p148 = pneg %p80
        $region22: #{tpu_custom_call.1} parent=11 // pred_check_branch
          %150 = sbr.rel (%p148) target = $region24
        $region23: #{tpu_custom_call.1} parent=11 // pred_region
          _
        $region24: #{tpu_custom_call.1} parent=11 // pred_fallthru
          _
        // Predicated region
        $region25: #{tpu_custom_call.1} parent=11 // pred_check
          %p151 = pneg %p101
        $region26: #{tpu_custom_call.1} parent=11 // pred_check_branch
          %153 = sbr.rel (%p151) target = $region28
        $region27: #{tpu_custom_call.1} parent=11 // pred_region
          %s155 = ssub.s32 32, 32
          %156 = vsyncadd [#allocation8], %s155
          %s158 = sshll.u32 [#allocation7], 4
          %s159 = int_to_ptr.vmem [resolvable:$true] %s158
          %161 = dma.hbm_to_vmem [thread:$0]  %s3, 32, %s159, [#allocation8]
        $region28: #{tpu_custom_call.1} parent=11 // pred_fallthru
          _
      $region12: #{tpu_custom_call.1} parent=5 // pred_fallthru
        _
      %p162 = scmp.lt.s32.totalorder %s17, 2
      // Predicated region
      $region29: #{tpu_custom_call.1} parent=5 // pred_check
        %p163 = pneg %p162
      $region30: #{tpu_custom_call.1} parent=5 // pred_check_branch
        %165 = sbr.rel (%p163) target = $region32
      $region31: #{tpu_custom_call.1} parent=5 // pred_region
        _
      $region32: #{tpu_custom_call.1} parent=5 // pred_fallthru
        _
      %p166 = scmp.le.s32.totalorder 1, %s17
      %p167 = scmp.lt.s32.totalorder %s17, 3
      %p168 = pnand %p166, %p167
      %p169 = pneg %p168
      // Predicated region
      $region33: #{tpu_custom_call.1} parent=5 // pred_check
        _
      $region34: #{tpu_custom_call.1} parent=5 // pred_check_branch
        %171 = sbr.rel (%p168) target = $region36
      $region35: #{tpu_custom_call.1} parent=5 // pred_region
        %s172 = ssub.s32 %s17, 1
        // Predicated region
        $region37: #{tpu_custom_call.1} parent=35 // pred_check
          %p173 = pneg %p101
        $region38: #{tpu_custom_call.1} parent=35 // pred_check_branch
          %175 = sbr.rel (%p173) target = $region40
        $region39: #{tpu_custom_call.1} parent=35 // pred_region
          %176 = dma.done [#allocation8], 32
        $region40: #{tpu_custom_call.1} parent=35 // pred_fallthru
          _
        %p177 = pneg %p38
        %p178 = pneg %p35
        %p179 = pneg %p59
        %p180 = pneg %p56
        %p181 = pneg %p80
        %p182 = pneg %p77
        %p183 = pneg %p101
        %p184 = pneg %p98
        %p185 = pneg %p127
        %p186 = pneg %p124
        %s187 = sand.u32 %s114, 1
        %s188 = scalar_lea.sflag [#allocation9], %s187
        %s189 = sand.u32 %s114, 1
        %s190 = smul.addr %s189, 16
        %s191 = scalar_lea.vmem [#allocation10], %s190
        %s192 = sld [smem:[#allocation5]]
        %s193 = sld [smem:[#allocation6]]
        %p194 = scmp.eq.s32.totalorder %s22, 0
        // Predicated region
        $region41: #{tpu_custom_call.1} parent=35 // pred_check
          %p195 = pneg %p194
        $region42: #{tpu_custom_call.1} parent=35 // pred_check_branch
          %197 = sbr.rel (%p195) target = $region44
        $region43: #{tpu_custom_call.1} parent=35 // pred_region
          // Predicated region
          $region45: #{tpu_custom_call.1} parent=43 // pred_check
            _
          $region46: #{tpu_custom_call.1} parent=43 // pred_check_branch
            %199 = sbr.rel target = $region48
          $region47: #{tpu_custom_call.1} parent=43 // pred_region
            %200 = sst [smem:[#allocation13]] [#allocation12]
            %201 = sst [smem:[#allocation14]] [#allocation11]
          $region48: #{tpu_custom_call.1} parent=43 // pred_fallthru
            _
          %203 = shalt.err (0)
          %s205 = sshll.u32 [#allocation2], 4
          %s206 = int_to_ptr.vmem [resolvable:$true] %s205
          %208 = dma.hbm_to_vmem [thread:$0]  %s4, 8192, %s206, [#allocation3]
          %v209 = vld [vmem:[%s2] sm:$0xf]
          %210 = vst [vmem:[#allocation4] sm:$0xf] %v209
          %s211 = smul.u32 8, 32
          %s212 = smul.u32 %s211, 2
          %s213 = sshll.u32 %s212, 4
          %214 = dma.done [#allocation3], %s213
        $region44: #{tpu_custom_call.1} parent=35 // pred_fallthru
          _
        %v215 = vld [vmem:[#allocation7] sm:$0x3]
        %v216 = vld [vmem:[#allocation4] ss:$2 sm:$0x3]
        %s217 = scalar_lea.vmem [#allocation4], 1
        %v218 = vld [vmem:[%s217] ss:$2 sm:$0x3]
        %v219 = vld [vmem:[#allocation2] sm:$0xff]
        %v220 = vld [vmem:[#allocation2 + $0x8] sm:$0xff]
        %v221 = vld [vmem:[#allocation2 + $0x10] sm:$0xff]
        %v222 = vld [vmem:[#allocation2 + $0x18] sm:$0xff]
        %v223 = vld [vmem:[#allocation2 + $0x20] sm:$0xff]
        %v224 = vld [vmem:[#allocation2 + $0x28] sm:$0xff]
        %v225 = vld [vmem:[#allocation2 + $0x30] sm:$0xff]
        %v226 = vld [vmem:[#allocation2 + $0x38] sm:$0xff]
        %v227 = vld [vmem:[#allocation2 + $0x40] sm:$0xff]
        %v228 = vld [vmem:[#allocation2 + $0x48] sm:$0xff]
        %v229 = vld [vmem:[#allocation2 + $0x50] sm:$0xff]
        %v230 = vld [vmem:[#allocation2 + $0x58] sm:$0xff]
        %v231 = vld [vmem:[#allocation2 + $0x60] sm:$0xff]
        %v232 = vld [vmem:[#allocation2 + $0x68] sm:$0xff]
        %v233 = vld [vmem:[#allocation2 + $0x70] sm:$0xff]
        %v234 = vld [vmem:[#allocation2 + $0x78] sm:$0xff]
        %v235 = vld [vmem:[#allocation2 + $0x80] sm:$0xff]
        %v236 = vld [vmem:[#allocation2 + $0x88] sm:$0xff]
        %v237 = vld [vmem:[#allocation2 + $0x90] sm:$0xff]
        %v238 = vld [vmem:[#allocation2 + $0x98] sm:$0xff]
        %v239 = vld [vmem:[#allocation2 + $0xa0] sm:$0xff]
        %v240 = vld [vmem:[#allocation2 + $0xa8] sm:$0xff]
        %v241 = vld [vmem:[#allocation2 + $0xb0] sm:$0xff]
        %v242 = vld [vmem:[#allocation2 + $0xb8] sm:$0xff]
        %v243 = vld [vmem:[#allocation2 + $0xc0] sm:$0xff]
        %v244 = vld [vmem:[#allocation2 + $0xc8] sm:$0xff]
        %v245 = vld [vmem:[#allocation2 + $0xd0] sm:$0xff]
        %v246 = vld [vmem:[#allocation2 + $0xd8] sm:$0xff]
        %v247 = vld [vmem:[#allocation2 + $0xe0] sm:$0xff]
        %v248 = vld [vmem:[#allocation2 + $0xe8] sm:$0xff]
        %v249 = vld [vmem:[#allocation2 + $0xf0] sm:$0xff]
        %v250 = vld [vmem:[#allocation2 + $0xf8] sm:$0xff]
        %v251 = vld [vmem:[#allocation2 + $0x100] sm:$0xff]
        %v252 = vld [vmem:[#allocation2 + $0x108] sm:$0xff]
        %v253 = vld [vmem:[#allocation2 + $0x110] sm:$0xff]
        %v254 = vld [vmem:[#allocation2 + $0x118] sm:$0xff]
        %v255 = vld [vmem:[#allocation2 + $0x120] sm:$0xff]
        %v256 = vld [vmem:[#allocation2 + $0x128] sm:$0xff]
        %v257 = vld [vmem:[#allocation2 + $0x130] sm:$0xff]
        %v258 = vld [vmem:[#allocation2 + $0x138] sm:$0xff]
        %v259 = vld [vmem:[#allocation2 + $0x140] sm:$0xff]
        %v260 = vld [vmem:[#allocation2 + $0x148] sm:$0xff]
        %v261 = vld [vmem:[#allocation2 + $0x150] sm:$0xff]
        %v262 = vld [vmem:[#allocation2 + $0x158] sm:$0xff]
        %v263 = vld [vmem:[#allocation2 + $0x160] sm:$0xff]
        %v264 = vld [vmem:[#allocation2 + $0x168] sm:$0xff]
        %v265 = vld [vmem:[#allocation2 + $0x170] sm:$0xff]
        %v266 = vld [vmem:[#allocation2 + $0x178] sm:$0xff]
        %v267 = vld [vmem:[#allocation2 + $0x180] sm:$0xff]
        %v268 = vld [vmem:[#allocation2 + $0x188] sm:$0xff]
        %v269 = vld [vmem:[#allocation2 + $0x190] sm:$0xff]
        %v270 = vld [vmem:[#allocation2 + $0x198] sm:$0xff]
        %v271 = vld [vmem:[#allocation2 + $0x1a0] sm:$0xff]
        %v272 = vld [vmem:[#allocation2 + $0x1a8] sm:$0xff]
        %v273 = vld [vmem:[#allocation2 + $0x1b0] sm:$0xff]
        %v274 = vld [vmem:[#allocation2 + $0x1b8] sm:$0xff]
        %v275 = vld [vmem:[#allocation2 + $0x1c0] sm:$0xff]
        %v276 = vld [vmem:[#allocation2 + $0x1c8] sm:$0xff]
        %v277 = vld [vmem:[#allocation2 + $0x1d0] sm:$0xff]
        %v278 = vld [vmem:[#allocation2 + $0x1d8] sm:$0xff]
        %v279 = vld [vmem:[#allocation2 + $0x1e0] sm:$0xff]
        %v280 = vld [vmem:[#allocation2 + $0x1e8] sm:$0xff]
        %v281 = vld [vmem:[#allocation2 + $0x1f0] sm:$0xff]
        %v282 = vld [vmem:[#allocation2 + $0x1f8] sm:$0xff]
        %v284 = vlaneseq
        %v285 = vshrl.u32 %v284, 7
        %v286 = vsub.s32 0, %v285
        %v287 = vrot.slane %v218, %v286
        %v288 = vlaneseq
        %v289 = vshrl.u32 %v288, 7
        %v290 = vsub.s32 1, %v289
        %v291 = vrot.slane %v218, %v290
        %294 = vmatprep.subr.mxu0 %v250
        %295 = vmatpush1.xpose.msra.mxu0 %v249
        %296 = vmatprep.subr.mxu0 %v248
        %297 = vmatpush1.xpose.msra.mxu0 %v247
        %298 = vmatprep.subr.mxu0 %v246
        %299 = vmatpush1.xpose.msra.mxu0 %v245
        %300 = vmatprep.subr.mxu0 %v244
        %301 = vmatpush1.xpose.msra.mxu0 %v243
        %302 = vmatprep.subr.mxu0 %v242
        %303 = vmatpush1.xpose.msra.mxu0 %v241
        %304 = vmatprep.subr.mxu0 %v240
        %305 = vmatpush1.xpose.msra.mxu0 %v239
        %306 = vmatprep.subr.mxu0 %v238
        %307 = vmatpush1.xpose.msra.mxu0 %v237
        %308 = vmatprep.subr.mxu0 %v236
        %309 = vmatpush1.xpose.msra.mxu0 %v235
        %310 = vmatprep.subr.mxu0 %v234
        %311 = vmatpush1.xpose.msra.mxu0 %v233
        %312 = vmatprep.subr.mxu0 %v232
        %313 = vmatpush1.xpose.msra.mxu0 %v231
        %314 = vmatprep.subr.mxu0 %v230
        %315 = vmatpush1.xpose.msra.mxu0 %v229
        %316 = vmatprep.subr.mxu0 %v228
        %317 = vmatpush1.xpose.msra.mxu0 %v227
        %318 = vmatprep.subr.mxu0 %v226
        %319 = vmatpush1.xpose.msra.mxu0 %v225
        %320 = vmatprep.subr.mxu0 %v224
        %321 = vmatpush1.xpose.msra.mxu0 %v223
        %322 = vmatprep.subr.mxu0 %v222
        %323 = vmatpush1.xpose.msra.mxu0 %v221
        %324 = vmatprep.subr.mxu0 %v220
        %325 = vmatpush1.xpose.msra.mxu0 %v219
        %326 = vmatprep.subr.mxu0 %v282
        %327 = vmatpush2.xpose.msra.mxu0 %v281
        %328 = vmatprep.subr.mxu0 %v280
        %329 = vmatpush2.xpose.msra.mxu0 %v279
        %330 = vmatprep.subr.mxu0 %v278
        %331 = vmatpush2.xpose.msra.mxu0 %v277
        %332 = vmatprep.subr.mxu0 %v276
        %333 = vmatpush2.xpose.msra.mxu0 %v275
        %334 = vmatprep.subr.mxu0 %v274
        %335 = vmatpush2.xpose.msra.mxu0 %v273
        %336 = vmatprep.subr.mxu0 %v272
        %337 = vmatpush2.xpose.msra.mxu0 %v271
        %338 = vmatprep.subr.mxu0 %v270
        %339 = vmatpush2.xpose.msra.mxu0 %v269
        %340 = vmatprep.subr.mxu0 %v268
        %341 = vmatpush2.xpose.msra.mxu0 %v267
        %342 = vmatprep.subr.mxu0 %v266
        %343 = vmatpush2.xpose.msra.mxu0 %v265
        %344 = vmatprep.subr.mxu0 %v264
        %345 = vmatpush2.xpose.msra.mxu0 %v263
        %346 = vmatprep.subr.mxu0 %v262
        %347 = vmatpush2.xpose.msra.mxu0 %v261
        %348 = vmatprep.subr.mxu0 %v260
        %349 = vmatpush2.xpose.msra.mxu0 %v259
        %350 = vmatprep.subr.mxu0 %v258
        %351 = vmatpush2.xpose.msra.mxu0 %v257
        %352 = vmatprep.subr.mxu0 %v256
        %353 = vmatpush2.xpose.msra.mxu0 %v255
        %354 = vmatprep.subr.mxu0 %v254
        %355 = vmatpush2.xpose.msra.mxu0 %v253
        %356 = vmatprep.subr.mxu0 %v252
        %357 = vmatpush2.xpose.msra.mxu0 %v251
        %358 = vmatprep.mubr.f32.mxu0 %v291
        %359 = vmatmul.mubr.f32.gmra.mxu0 %v287
        %v360 = vpop.f32.mrf.mxu0
        %v361 = vadd.f32 0.0, %v360
        %v362 = vpop.f32.mrf.mxu0
        %v363 = vadd.f32 0.0, %v362
        %364 = vdwg.mxu0
        %v366 = vlaneseq
        %v367 = vshrl.u32 %v366, 7
        %v368 = vsub.s32 0, %v367
        %v369 = vrot.slane %v215, %v368
        %v370 = vlaneseq
        %v371 = vshrl.u32 %v370, 7
        %v372 = vsub.s32 1, %v371
        %v373 = vrot.slane %v215, %v372
        %v376 = vsub.f32 %v361, %v369
        %v377 = vsub.f32 %v363, %v373
        %v378 = vstv %s192
        %v379 = vmul.f32 %v378, %v376
        %v380 = vmul.f32 %v378, %v377
        %v383 = vcombine.low %v379, %v380
        %v385 = vunpack.c.l.s4 1966171168
        %v386 = vunpack.c.0.s8 %v385
        %v387 = vlaneseq
        %v388 = vshrl.u32 %v387, 7
        %v389 = vsub.s32 %v386, %v388
        %v390 = vrot.slane %v383, %v389
        %v392 = vunpack.c.l.s4 1966171168
        %v393 = vunpack.c.0.s8 %v392
        %v394 = vlaneseq
        %v395 = vshrl.u32 %v394, 7
        %v396 = vsub.s32 %v393, %v395
        %v397 = vrot.slane %v390, %v396
        %v399 = vsub.f32 %v218, %v397
        %v400 = vsub.f32 %v218, %v216
        %v401 = vstv %s193
        %v402 = vmul.f32 %v401, %v400
        %v403 = vadd.f32 %v399, %v402
        %v404 = vlaneseq
        %vm405 = vcmp.ge.s32.totalorder %v404, 0
        %vm406 = vcmp.lt.s32.totalorder %v404, 256
        %vm407 = vmand %vm405, %vm406
        %408 = vst.msk [vmem:[%s191] ss:$8 sm:$0x3] %vm407, %v403
        %409 = vst.msk [vmem:[%s191] ss:$8 sm:$0x0] %vm407, %v403
        %v410 = vld [vmem:[#allocation2] sm:$0xff]
        %v411 = vld [vmem:[#allocation2 + $0x8] sm:$0xff]
        %v412 = vld [vmem:[#allocation2 + $0x10] sm:$0xff]
        %v413 = vld [vmem:[#allocation2 + $0x18] sm:$0xff]
        %v414 = vld [vmem:[#allocation2 + $0x20] sm:$0xff]
        %v415 = vld [vmem:[#allocation2 + $0x28] sm:$0xff]
        %v416 = vld [vmem:[#allocation2 + $0x30] sm:$0xff]
        %v417 = vld [vmem:[#allocation2 + $0x38] sm:$0xff]
        %v418 = vld [vmem:[#allocation2 + $0x40] sm:$0xff]
        %v419 = vld [vmem:[#allocation2 + $0x48] sm:$0xff]
        %v420 = vld [vmem:[#allocation2 + $0x50] sm:$0xff]
        %v421 = vld [vmem:[#allocation2 + $0x58] sm:$0xff]
        %v422 = vld [vmem:[#allocation2 + $0x60] sm:$0xff]
        %v423 = vld [vmem:[#allocation2 + $0x68] sm:$0xff]
        %v424 = vld [vmem:[#allocation2 + $0x70] sm:$0xff]
        %v425 = vld [vmem:[#allocation2 + $0x78] sm:$0xff]
        %v426 = vld [vmem:[#allocation2 + $0x80] sm:$0xff]
        %v427 = vld [vmem:[#allocation2 + $0x88] sm:$0xff]
        %v428 = vld [vmem:[#allocation2 + $0x90] sm:$0xff]
        %v429 = vld [vmem:[#allocation2 + $0x98] sm:$0xff]
        %v430 = vld [vmem:[#allocation2 + $0xa0] sm:$0xff]
        %v431 = vld [vmem:[#allocation2 + $0xa8] sm:$0xff]
        %v432 = vld [vmem:[#allocation2 + $0xb0] sm:$0xff]
        %v433 = vld [vmem:[#allocation2 + $0xb8] sm:$0xff]
        %v434 = vld [vmem:[#allocation2 + $0xc0] sm:$0xff]
        %v435 = vld [vmem:[#allocation2 + $0xc8] sm:$0xff]
        %v436 = vld [vmem:[#allocation2 + $0xd0] sm:$0xff]
        %v437 = vld [vmem:[#allocation2 + $0xd8] sm:$0xff]
        %v438 = vld [vmem:[#allocation2 + $0xe0] sm:$0xff]
        %v439 = vld [vmem:[#allocation2 + $0xe8] sm:$0xff]
        %v440 = vld [vmem:[#allocation2 + $0xf0] sm:$0xff]
        %v441 = vld [vmem:[#allocation2 + $0xf8] sm:$0xff]
        %v442 = vld [vmem:[#allocation2 + $0x100] sm:$0xff]
        %v443 = vld [vmem:[#allocation2 + $0x108] sm:$0xff]
        %v444 = vld [vmem:[#allocation2 + $0x110] sm:$0xff]
        %v445 = vld [vmem:[#allocation2 + $0x118] sm:$0xff]
        %v446 = vld [vmem:[#allocation2 + $0x120] sm:$0xff]
        %v447 = vld [vmem:[#allocation2 + $0x128] sm:$0xff]
        %v448 = vld [vmem:[#allocation2 + $0x130] sm:$0xff]
        %v449 = vld [vmem:[#allocation2 + $0x138] sm:$0xff]
        %v450 = vld [vmem:[#allocation2 + $0x140] sm:$0xff]
        %v451 = vld [vmem:[#allocation2 + $0x148] sm:$0xff]
        %v452 = vld [vmem:[#allocation2 + $0x150] sm:$0xff]
        %v453 = vld [vmem:[#allocation2 + $0x158] sm:$0xff]
        %v454 = vld [vmem:[#allocation2 + $0x160] sm:$0xff]
        %v455 = vld [vmem:[#allocation2 + $0x168] sm:$0xff]
        %v456 = vld [vmem:[#allocation2 + $0x170] sm:$0xff]
        %v457 = vld [vmem:[#allocation2 + $0x178] sm:$0xff]
        %v458 = vld [vmem:[#allocation2 + $0x180] sm:$0xff]
        %v459 = vld [vmem:[#allocation2 + $0x188] sm:$0xff]
        %v460 = vld [vmem:[#allocation2 + $0x190] sm:$0xff]
        %v461 = vld [vmem:[#allocation2 + $0x198] sm:$0xff]
        %v462 = vld [vmem:[#allocation2 + $0x1a0] sm:$0xff]
        %v463 = vld [vmem:[#allocation2 + $0x1a8] sm:$0xff]
        %v464 = vld [vmem:[#allocation2 + $0x1b0] sm:$0xff]
        %v465 = vld [vmem:[#allocation2 + $0x1b8] sm:$0xff]
        %v466 = vld [vmem:[#allocation2 + $0x1c0] sm:$0xff]
        %v467 = vld [vmem:[#allocation2 + $0x1c8] sm:$0xff]
        %v468 = vld [vmem:[#allocation2 + $0x1d0] sm:$0xff]
        %v469 = vld [vmem:[#allocation2 + $0x1d8] sm:$0xff]
        %v470 = vld [vmem:[#allocation2 + $0x1e0] sm:$0xff]
        %v471 = vld [vmem:[#allocation2 + $0x1e8] sm:$0xff]
        %v472 = vld [vmem:[#allocation2 + $0x1f0] sm:$0xff]
        %v473 = vld [vmem:[#allocation2 + $0x1f8] sm:$0xff]
        %v475 = vlaneseq
        %v476 = vshrl.u32 %v475, 7
        %v477 = vsub.s32 0, %v476
        %v478 = vrot.slane %v403, %v477
        %v479 = vlaneseq
        %v480 = vshrl.u32 %v479, 7
        %v481 = vsub.s32 1, %v480
        %v482 = vrot.slane %v403, %v481
        %485 = vmatprep.subr.mxu0 %v441
        %486 = vmatpush1.xpose.msra.mxu0 %v440
        %487 = vmatprep.subr.mxu0 %v439
        %488 = vmatpush1.xpose.msra.mxu0 %v438
        %489 = vmatprep.subr.mxu0 %v437
        %490 = vmatpush1.xpose.msra.mxu0 %v436
        %491 = vmatprep.subr.mxu0 %v435
        %492 = vmatpush1.xpose.msra.mxu0 %v434
        %493 = vmatprep.subr.mxu0 %v433
        %494 = vmatpush1.xpose.msra.mxu0 %v432
        %495 = vmatprep.subr.mxu0 %v431
        %496 = vmatpush1.xpose.msra.mxu0 %v430
        %497 = vmatprep.subr.mxu0 %v429
        %498 = vmatpush1.xpose.msra.mxu0 %v428
        %499 = vmatprep.subr.mxu0 %v427
        %500 = vmatpush1.xpose.msra.mxu0 %v426
        %501 = vmatprep.subr.mxu0 %v425
        %502 = vmatpush1.xpose.msra.mxu0 %v424
        %503 = vmatprep.subr.mxu0 %v423
        %504 = vmatpush1.xpose.msra.mxu0 %v422
        %505 = vmatprep.subr.mxu0 %v421
        %506 = vmatpush1.xpose.msra.mxu0 %v420
        %507 = vmatprep.subr.mxu0 %v419
        %508 = vmatpush1.xpose.msra.mxu0 %v418
        %509 = vmatprep.subr.mxu0 %v417
        %510 = vmatpush1.xpose.msra.mxu0 %v416
        %511 = vmatprep.subr.mxu0 %v415
        %512 = vmatpush1.xpose.msra.mxu0 %v414
        %513 = vmatprep.subr.mxu0 %v413
        %514 = vmatpush1.xpose.msra.mxu0 %v412
        %515 = vmatprep.subr.mxu0 %v411
        %516 = vmatpush1.xpose.msra.mxu0 %v410
        %517 = vmatprep.subr.mxu0 %v473
        %518 = vmatpush2.xpose.msra.mxu0 %v472
        %519 = vmatprep.subr.mxu0 %v471
        %520 = vmatpush2.xpose.msra.mxu0 %v470
        %521 = vmatprep.subr.mxu0 %v469
        %522 = vmatpush2.xpose.msra.mxu0 %v468
        %523 = vmatprep.subr.mxu0 %v467
        %524 = vmatpush2.xpose.msra.mxu0 %v466
        %525 = vmatprep.subr.mxu0 %v465
        %526 = vmatpush2.xpose.msra.mxu0 %v464
        %527 = vmatprep.subr.mxu0 %v463
        %528 = vmatpush2.xpose.msra.mxu0 %v462
        %529 = vmatprep.subr.mxu0 %v461
        %530 = vmatpush2.xpose.msra.mxu0 %v460
        %531 = vmatprep.subr.mxu0 %v459
        %532 = vmatpush2.xpose.msra.mxu0 %v458
        %533 = vmatprep.subr.mxu0 %v457
        %534 = vmatpush2.xpose.msra.mxu0 %v456
        %535 = vmatprep.subr.mxu0 %v455
        %536 = vmatpush2.xpose.msra.mxu0 %v454
        %537 = vmatprep.subr.mxu0 %v453
        %538 = vmatpush2.xpose.msra.mxu0 %v452
        %539 = vmatprep.subr.mxu0 %v451
        %540 = vmatpush2.xpose.msra.mxu0 %v450
        %541 = vmatprep.subr.mxu0 %v449
        %542 = vmatpush2.xpose.msra.mxu0 %v448
        %543 = vmatprep.subr.mxu0 %v447
        %544 = vmatpush2.xpose.msra.mxu0 %v446
        %545 = vmatprep.subr.mxu0 %v445
        %546 = vmatpush2.xpose.msra.mxu0 %v444
        %547 = vmatprep.subr.mxu0 %v443
        %548 = vmatpush2.xpose.msra.mxu0 %v442
        %549 = vmatprep.mubr.f32.mxu0 %v482
        %550 = vmatmul.mubr.f32.gmra.mxu0 %v478
        %v551 = vpop.f32.mrf.mxu0
        %v552 = vadd.f32 0.0, %v551
        %v553 = vpop.f32.mrf.mxu0
        %v554 = vadd.f32 0.0, %v553
        %555 = vdwg.mxu0
        %v556 = vsub.f32 %v552, %v369
        %v557 = vsub.f32 %v554, %v373
        %v558 = vmul.f32 %v378, %v556
        %v559 = vmul.f32 %v378, %v557
        %v562 = vcombine.low %v558, %v559
        %v564 = vunpack.c.l.s4 1966171168
        %v565 = vunpack.c.0.s8 %v564
        %v566 = vlaneseq
        %v567 = vshrl.u32 %v566, 7
        %v568 = vsub.s32 %v565, %v567
        %v569 = vrot.slane %v562, %v568
        %v571 = vunpack.c.l.s4 1966171168
        %v572 = vunpack.c.0.s8 %v571
        %v573 = vlaneseq
        %v574 = vshrl.u32 %v573, 7
        %v575 = vsub.s32 %v572, %v574
        %v576 = vrot.slane %v569, %v575
        %v578 = vsub.f32 %v403, %v576
        %v579 = vsub.f32 %v403, %v218
        %v580 = vmul.f32 %v401, %v579
        %v581 = vadd.f32 %v578, %v580
        %s582 = scalar_lea.vmem %s191, 1 [#allocation10]
        %583 = vst.msk [vmem:[%s582] ss:$8 sm:$0x3] %vm407, %v581
        %584 = vst.msk [vmem:[%s582] ss:$8 sm:$0x0] %vm407, %v581
        %v585 = vld [vmem:[#allocation2] sm:$0xff]
        %v586 = vld [vmem:[#allocation2 + $0x8] sm:$0xff]
        %v587 = vld [vmem:[#allocation2 + $0x10] sm:$0xff]
        %v588 = vld [vmem:[#allocation2 + $0x18] sm:$0xff]
        %v589 = vld [vmem:[#allocation2 + $0x20] sm:$0xff]
        %v590 = vld [vmem:[#allocation2 + $0x28] sm:$0xff]
        %v591 = vld [vmem:[#allocation2 + $0x30] sm:$0xff]
        %v592 = vld [vmem:[#allocation2 + $0x38] sm:$0xff]
        %v593 = vld [vmem:[#allocation2 + $0x40] sm:$0xff]
        %v594 = vld [vmem:[#allocation2 + $0x48] sm:$0xff]
        %v595 = vld [vmem:[#allocation2 + $0x50] sm:$0xff]
        %v596 = vld [vmem:[#allocation2 + $0x58] sm:$0xff]
        %v597 = vld [vmem:[#allocation2 + $0x60] sm:$0xff]
        %v598 = vld [vmem:[#allocation2 + $0x68] sm:$0xff]
        %v599 = vld [vmem:[#allocation2 + $0x70] sm:$0xff]
        %v600 = vld [vmem:[#allocation2 + $0x78] sm:$0xff]
        %v601 = vld [vmem:[#allocation2 + $0x80] sm:$0xff]
        %v602 = vld [vmem:[#allocation2 + $0x88] sm:$0xff]
        %v603 = vld [vmem:[#allocation2 + $0x90] sm:$0xff]
        %v604 = vld [vmem:[#allocation2 + $0x98] sm:$0xff]
        %v605 = vld [vmem:[#allocation2 + $0xa0] sm:$0xff]
        %v606 = vld [vmem:[#allocation2 + $0xa8] sm:$0xff]
        %v607 = vld [vmem:[#allocation2 + $0xb0] sm:$0xff]
        %v608 = vld [vmem:[#allocation2 + $0xb8] sm:$0xff]
        %v609 = vld [vmem:[#allocation2 + $0xc0] sm:$0xff]
        %v610 = vld [vmem:[#allocation2 + $0xc8] sm:$0xff]
        %v611 = vld [vmem:[#allocation2 + $0xd0] sm:$0xff]
        %v612 = vld [vmem:[#allocation2 + $0xd8] sm:$0xff]
        %v613 = vld [vmem:[#allocation2 + $0xe0] sm:$0xff]
        %v614 = vld [vmem:[#allocation2 + $0xe8] sm:$0xff]
        %v615 = vld [vmem:[#allocation2 + $0xf0] sm:$0xff]
        %v616 = vld [vmem:[#allocation2 + $0xf8] sm:$0xff]
        %v617 = vld [vmem:[#allocation2 + $0x100] sm:$0xff]
        %v618 = vld [vmem:[#allocation2 + $0x108] sm:$0xff]
        %v619 = vld [vmem:[#allocation2 + $0x110] sm:$0xff]
        %v620 = vld [vmem:[#allocation2 + $0x118] sm:$0xff]
        %v621 = vld [vmem:[#allocation2 + $0x120] sm:$0xff]
        %v622 = vld [vmem:[#allocation2 + $0x128] sm:$0xff]
        %v623 = vld [vmem:[#allocation2 + $0x130] sm:$0xff]
        %v624 = vld [vmem:[#allocation2 + $0x138] sm:$0xff]
        %v625 = vld [vmem:[#allocation2 + $0x140] sm:$0xff]
        %v626 = vld [vmem:[#allocation2 + $0x148] sm:$0xff]
        %v627 = vld [vmem:[#allocation2 + $0x150] sm:$0xff]
        %v628 = vld [vmem:[#allocation2 + $0x158] sm:$0xff]
        %v629 = vld [vmem:[#allocation2 + $0x160] sm:$0xff]
        %v630 = vld [vmem:[#allocation2 + $0x168] sm:$0xff]
        %v631 = vld [vmem:[#allocation2 + $0x170] sm:$0xff]
        %v632 = vld [vmem:[#allocation2 + $0x178] sm:$0xff]
        %v633 = vld [vmem:[#allocation2 + $0x180] sm:$0xff]
        %v634 = vld [vmem:[#allocation2 + $0x188] sm:$0xff]
        %v635 = vld [vmem:[#allocation2 + $0x190] sm:$0xff]
        %v636 = vld [vmem:[#allocation2 + $0x198] sm:$0xff]
        %v637 = vld [vmem:[#allocation2 + $0x1a0] sm:$0xff]
        %v638 = vld [vmem:[#allocation2 + $0x1a8] sm:$0xff]
        %v639 = vld [vmem:[#allocation2 + $0x1b0] sm:$0xff]
        %v640 = vld [vmem:[#allocation2 + $0x1b8] sm:$0xff]
        %v641 = vld [vmem:[#allocation2 + $0x1c0] sm:$0xff]
        %v642 = vld [vmem:[#allocation2 + $0x1c8] sm:$0xff]
        %v643 = vld [vmem:[#allocation2 + $0x1d0] sm:$0xff]
        %v644 = vld [vmem:[#allocation2 + $0x1d8] sm:$0xff]
        %v645 = vld [vmem:[#allocation2 + $0x1e0] sm:$0xff]
        %v646 = vld [vmem:[#allocation2 + $0x1e8] sm:$0xff]
        %v647 = vld [vmem:[#allocation2 + $0x1f0] sm:$0xff]
        %v648 = vld [vmem:[#allocation2 + $0x1f8] sm:$0xff]
        %v650 = vlaneseq
        %v651 = vshrl.u32 %v650, 7
        %v652 = vsub.s32 0, %v651
        %v653 = vrot.slane %v581, %v652
        %v654 = vlaneseq
        %v655 = vshrl.u32 %v654, 7
        %v656 = vsub.s32 1, %v655
        %v657 = vrot.slane %v581, %v656
        %660 = vmatprep.subr.mxu0 %v616
        %661 = vmatpush1.xpose.msra.mxu0 %v615
        %662 = vmatprep.subr.mxu0 %v614
        %663 = vmatpush1.xpose.msra.mxu0 %v613
        %664 = vmatprep.subr.mxu0 %v612
        %665 = vmatpush1.xpose.msra.mxu0 %v611
        %666 = vmatprep.subr.mxu0 %v610
        %667 = vmatpush1.xpose.msra.mxu0 %v609
        %668 = vmatprep.subr.mxu0 %v608
        %669 = vmatpush1.xpose.msra.mxu0 %v607
        %670 = vmatprep.subr.mxu0 %v606
        %671 = vmatpush1.xpose.msra.mxu0 %v605
        %672 = vmatprep.subr.mxu0 %v604
        %673 = vmatpush1.xpose.msra.mxu0 %v603
        %674 = vmatprep.subr.mxu0 %v602
        %675 = vmatpush1.xpose.msra.mxu0 %v601
        %676 = vmatprep.subr.mxu0 %v600
        %677 = vmatpush1.xpose.msra.mxu0 %v599
        %678 = vmatprep.subr.mxu0 %v598
        %679 = vmatpush1.xpose.msra.mxu0 %v597
        %680 = vmatprep.subr.mxu0 %v596
        %681 = vmatpush1.xpose.msra.mxu0 %v595
        %682 = vmatprep.subr.mxu0 %v594
        %683 = vmatpush1.xpose.msra.mxu0 %v593
        %684 = vmatprep.subr.mxu0 %v592
        %685 = vmatpush1.xpose.msra.mxu0 %v591
        %686 = vmatprep.subr.mxu0 %v590
        %687 = vmatpush1.xpose.msra.mxu0 %v589
        %688 = vmatprep.subr.mxu0 %v588
        %689 = vmatpush1.xpose.msra.mxu0 %v587
        %690 = vmatprep.subr.mxu0 %v586
        %691 = vmatpush1.xpose.msra.mxu0 %v585
        %692 = vmatprep.subr.mxu0 %v648
        %693 = vmatpush2.xpose.msra.mxu0 %v647
        %694 = vmatprep.subr.mxu0 %v646
        %695 = vmatpush2.xpose.msra.mxu0 %v645
        %696 = vmatprep.subr.mxu0 %v644
        %697 = vmatpush2.xpose.msra.mxu0 %v643
        %698 = vmatprep.subr.mxu0 %v642
        %699 = vmatpush2.xpose.msra.mxu0 %v641
        %700 = vmatprep.subr.mxu0 %v640
        %701 = vmatpush2.xpose.msra.mxu0 %v639
        %702 = vmatprep.subr.mxu0 %v638
        %703 = vmatpush2.xpose.msra.mxu0 %v637
        %704 = vmatprep.subr.mxu0 %v636
        %705 = vmatpush2.xpose.msra.mxu0 %v635
        %706 = vmatprep.subr.mxu0 %v634
        %707 = vmatpush2.xpose.msra.mxu0 %v633
        %708 = vmatprep.subr.mxu0 %v632
        %709 = vmatpush2.xpose.msra.mxu0 %v631
        %710 = vmatprep.subr.mxu0 %v630
        %711 = vmatpush2.xpose.msra.mxu0 %v629
        %712 = vmatprep.subr.mxu0 %v628
        %713 = vmatpush2.xpose.msra.mxu0 %v627
        %714 = vmatprep.subr.mxu0 %v626
        %715 = vmatpush2.xpose.msra.mxu0 %v625
        %716 = vmatprep.subr.mxu0 %v624
        %717 = vmatpush2.xpose.msra.mxu0 %v623
        %718 = vmatprep.subr.mxu0 %v622
        %719 = vmatpush2.xpose.msra.mxu0 %v621
        %720 = vmatprep.subr.mxu0 %v620
        %721 = vmatpush2.xpose.msra.mxu0 %v619
        %722 = vmatprep.subr.mxu0 %v618
        %723 = vmatpush2.xpose.msra.mxu0 %v617
        %724 = vmatprep.mubr.f32.mxu0 %v657
        %725 = vmatmul.mubr.f32.gmra.mxu0 %v653
        %v726 = vpop.f32.mrf.mxu0
        %v727 = vadd.f32 0.0, %v726
        %v728 = vpop.f32.mrf.mxu0
        %v729 = vadd.f32 0.0, %v728
        %730 = vdwg.mxu0
        %v731 = vsub.f32 %v727, %v369
        %v732 = vsub.f32 %v729, %v373
        %v733 = vmul.f32 %v378, %v731
        %v734 = vmul.f32 %v378, %v732
        %v737 = vcombine.low %v733, %v734
        %v739 = vunpack.c.l.s4 1966171168
        %v740 = vunpack.c.0.s8 %v739
        %v741 = vlaneseq
        %v742 = vshrl.u32 %v741, 7
        %v743 = vsub.s32 %v740, %v742
        %v744 = vrot.slane %v737, %v743
        %v746 = vunpack.c.l.s4 1966171168
        %v747 = vunpack.c.0.s8 %v746
        %v748 = vlaneseq
        %v749 = vshrl.u32 %v748, 7
        %v750 = vsub.s32 %v747, %v749
        %v751 = vrot.slane %v744, %v750
        %v753 = vsub.f32 %v581, %v751
        %v754 = vsub.f32 %v581, %v403
        %v755 = vmul.f32 %v401, %v754
        %v756 = vadd.f32 %v753, %v755
        %s757 = scalar_lea.vmem %s191, 2 [#allocation10]
        %758 = vst.msk [vmem:[%s757] ss:$8 sm:$0x3] %vm407, %v756
        %759 = vst.msk [vmem:[%s757] ss:$8 sm:$0x0] %vm407, %v756
        %v760 = vld [vmem:[#allocation2] sm:$0xff]
        %v761 = vld [vmem:[#allocation2 + $0x8] sm:$0xff]
        %v762 = vld [vmem:[#allocation2 + $0x10] sm:$0xff]
        %v763 = vld [vmem:[#allocation2 + $0x18] sm:$0xff]
        %v764 = vld [vmem:[#allocation2 + $0x20] sm:$0xff]
        %v765 = vld [vmem:[#allocation2 + $0x28] sm:$0xff]
        %v766 = vld [vmem:[#allocation2 + $0x30] sm:$0xff]
        %v767 = vld [vmem:[#allocation2 + $0x38] sm:$0xff]
        %v768 = vld [vmem:[#allocation2 + $0x40] sm:$0xff]
        %v769 = vld [vmem:[#allocation2 + $0x48] sm:$0xff]
        %v770 = vld [vmem:[#allocation2 + $0x50] sm:$0xff]
        %v771 = vld [vmem:[#allocation2 + $0x58] sm:$0xff]
        %v772 = vld [vmem:[#allocation2 + $0x60] sm:$0xff]
        %v773 = vld [vmem:[#allocation2 + $0x68] sm:$0xff]
        %v774 = vld [vmem:[#allocation2 + $0x70] sm:$0xff]
        %v775 = vld [vmem:[#allocation2 + $0x78] sm:$0xff]
        %v776 = vld [vmem:[#allocation2 + $0x80] sm:$0xff]
        %v777 = vld [vmem:[#allocation2 + $0x88] sm:$0xff]
        %v778 = vld [vmem:[#allocation2 + $0x90] sm:$0xff]
        %v779 = vld [vmem:[#allocation2 + $0x98] sm:$0xff]
        %v780 = vld [vmem:[#allocation2 + $0xa0] sm:$0xff]
        %v781 = vld [vmem:[#allocation2 + $0xa8] sm:$0xff]
        %v782 = vld [vmem:[#allocation2 + $0xb0] sm:$0xff]
        %v783 = vld [vmem:[#allocation2 + $0xb8] sm:$0xff]
        %v784 = vld [vmem:[#allocation2 + $0xc0] sm:$0xff]
        %v785 = vld [vmem:[#allocation2 + $0xc8] sm:$0xff]
        %v786 = vld [vmem:[#allocation2 + $0xd0] sm:$0xff]
        %v787 = vld [vmem:[#allocation2 + $0xd8] sm:$0xff]
        %v788 = vld [vmem:[#allocation2 + $0xe0] sm:$0xff]
        %v789 = vld [vmem:[#allocation2 + $0xe8] sm:$0xff]
        %v790 = vld [vmem:[#allocation2 + $0xf0] sm:$0xff]
        %v791 = vld [vmem:[#allocation2 + $0xf8] sm:$0xff]
        %v792 = vld [vmem:[#allocation2 + $0x100] sm:$0xff]
        %v793 = vld [vmem:[#allocation2 + $0x108] sm:$0xff]
        %v794 = vld [vmem:[#allocation2 + $0x110] sm:$0xff]
        %v795 = vld [vmem:[#allocation2 + $0x118] sm:$0xff]
        %v796 = vld [vmem:[#allocation2 + $0x120] sm:$0xff]
        %v797 = vld [vmem:[#allocation2 + $0x128] sm:$0xff]
        %v798 = vld [vmem:[#allocation2 + $0x130] sm:$0xff]
        %v799 = vld [vmem:[#allocation2 + $0x138] sm:$0xff]
        %v800 = vld [vmem:[#allocation2 + $0x140] sm:$0xff]
        %v801 = vld [vmem:[#allocation2 + $0x148] sm:$0xff]
        %v802 = vld [vmem:[#allocation2 + $0x150] sm:$0xff]
        %v803 = vld [vmem:[#allocation2 + $0x158] sm:$0xff]
        %v804 = vld [vmem:[#allocation2 + $0x160] sm:$0xff]
        %v805 = vld [vmem:[#allocation2 + $0x168] sm:$0xff]
        %v806 = vld [vmem:[#allocation2 + $0x170] sm:$0xff]
        %v807 = vld [vmem:[#allocation2 + $0x178] sm:$0xff]
        %v808 = vld [vmem:[#allocation2 + $0x180] sm:$0xff]
        %v809 = vld [vmem:[#allocation2 + $0x188] sm:$0xff]
        %v810 = vld [vmem:[#allocation2 + $0x190] sm:$0xff]
        %v811 = vld [vmem:[#allocation2 + $0x198] sm:$0xff]
        %v812 = vld [vmem:[#allocation2 + $0x1a0] sm:$0xff]
        %v813 = vld [vmem:[#allocation2 + $0x1a8] sm:$0xff]
        %v814 = vld [vmem:[#allocation2 + $0x1b0] sm:$0xff]
        %v815 = vld [vmem:[#allocation2 + $0x1b8] sm:$0xff]
        %v816 = vld [vmem:[#allocation2 + $0x1c0] sm:$0xff]
        %v817 = vld [vmem:[#allocation2 + $0x1c8] sm:$0xff]
        %v818 = vld [vmem:[#allocation2 + $0x1d0] sm:$0xff]
        %v819 = vld [vmem:[#allocation2 + $0x1d8] sm:$0xff]
        %v820 = vld [vmem:[#allocation2 + $0x1e0] sm:$0xff]
        %v821 = vld [vmem:[#allocation2 + $0x1e8] sm:$0xff]
        %v822 = vld [vmem:[#allocation2 + $0x1f0] sm:$0xff]
        %v823 = vld [vmem:[#allocation2 + $0x1f8] sm:$0xff]
        %v825 = vlaneseq
        %v826 = vshrl.u32 %v825, 7
        %v827 = vsub.s32 0, %v826
        %v828 = vrot.slane %v756, %v827
        %v829 = vlaneseq
        %v830 = vshrl.u32 %v829, 7
        %v831 = vsub.s32 1, %v830
        %v832 = vrot.slane %v756, %v831
        %835 = vmatprep.subr.mxu0 %v791
        %836 = vmatpush1.xpose.msra.mxu0 %v790
        %837 = vmatprep.subr.mxu0 %v789
        %838 = vmatpush1.xpose.msra.mxu0 %v788
        %839 = vmatprep.subr.mxu0 %v787
        %840 = vmatpush1.xpose.msra.mxu0 %v786
        %841 = vmatprep.subr.mxu0 %v785
        %842 = vmatpush1.xpose.msra.mxu0 %v784
        %843 = vmatprep.subr.mxu0 %v783
        %844 = vmatpush1.xpose.msra.mxu0 %v782
        %845 = vmatprep.subr.mxu0 %v781
        %846 = vmatpush1.xpose.msra.mxu0 %v780
        %847 = vmatprep.subr.mxu0 %v779
        %848 = vmatpush1.xpose.msra.mxu0 %v778
        %849 = vmatprep.subr.mxu0 %v777
        %850 = vmatpush1.xpose.msra.mxu0 %v776
        %851 = vmatprep.subr.mxu0 %v775
        %852 = vmatpush1.xpose.msra.mxu0 %v774
        %853 = vmatprep.subr.mxu0 %v773
        %854 = vmatpush1.xpose.msra.mxu0 %v772
        %855 = vmatprep.subr.mxu0 %v771
        %856 = vmatpush1.xpose.msra.mxu0 %v770
        %857 = vmatprep.subr.mxu0 %v769
        %858 = vmatpush1.xpose.msra.mxu0 %v768
        %859 = vmatprep.subr.mxu0 %v767
        %860 = vmatpush1.xpose.msra.mxu0 %v766
        %861 = vmatprep.subr.mxu0 %v765
        %862 = vmatpush1.xpose.msra.mxu0 %v764
        %863 = vmatprep.subr.mxu0 %v763
        %864 = vmatpush1.xpose.msra.mxu0 %v762
        %865 = vmatprep.subr.mxu0 %v761
        %866 = vmatpush1.xpose.msra.mxu0 %v760
        %867 = vmatprep.subr.mxu0 %v823
        %868 = vmatpush2.xpose.msra.mxu0 %v822
        %869 = vmatprep.subr.mxu0 %v821
        %870 = vmatpush2.xpose.msra.mxu0 %v820
        %871 = vmatprep.subr.mxu0 %v819
        %872 = vmatpush2.xpose.msra.mxu0 %v818
        %873 = vmatprep.subr.mxu0 %v817
        %874 = vmatpush2.xpose.msra.mxu0 %v816
        %875 = vmatprep.subr.mxu0 %v815
        %876 = vmatpush2.xpose.msra.mxu0 %v814
        %877 = vmatprep.subr.mxu0 %v813
        %878 = vmatpush2.xpose.msra.mxu0 %v812
        %879 = vmatprep.subr.mxu0 %v811
        %880 = vmatpush2.xpose.msra.mxu0 %v810
        %881 = vmatprep.subr.mxu0 %v809
        %882 = vmatpush2.xpose.msra.mxu0 %v808
        %883 = vmatprep.subr.mxu0 %v807
        %884 = vmatpush2.xpose.msra.mxu0 %v806
        %885 = vmatprep.subr.mxu0 %v805
        %886 = vmatpush2.xpose.msra.mxu0 %v804
        %887 = vmatprep.subr.mxu0 %v803
        %888 = vmatpush2.xpose.msra.mxu0 %v802
        %889 = vmatprep.subr.mxu0 %v801
        %890 = vmatpush2.xpose.msra.mxu0 %v800
        %891 = vmatprep.subr.mxu0 %v799
        %892 = vmatpush2.xpose.msra.mxu0 %v798
        %893 = vmatprep.subr.mxu0 %v797
        %894 = vmatpush2.xpose.msra.mxu0 %v796
        %895 = vmatprep.subr.mxu0 %v795
        %896 = vmatpush2.xpose.msra.mxu0 %v794
        %897 = vmatprep.subr.mxu0 %v793
        %898 = vmatpush2.xpose.msra.mxu0 %v792
        %899 = vmatprep.mubr.f32.mxu0 %v832
        %900 = vmatmul.mubr.f32.gmra.mxu0 %v828
        %v901 = vpop.f32.mrf.mxu0
        %v902 = vadd.f32 0.0, %v901
        %v903 = vpop.f32.mrf.mxu0
        %v904 = vadd.f32 0.0, %v903
        %905 = vdwg.mxu0
        %v906 = vsub.f32 %v902, %v369
        %v907 = vsub.f32 %v904, %v373
        %v908 = vmul.f32 %v378, %v906
        %v909 = vmul.f32 %v378, %v907
        %v912 = vcombine.low %v908, %v909
        %v914 = vunpack.c.l.s4 1966171168
        %v915 = vunpack.c.0.s8 %v914
        %v916 = vlaneseq
        %v917 = vshrl.u32 %v916, 7
        %v918 = vsub.s32 %v915, %v917
        %v919 = vrot.slane %v912, %v918
        %v921 = vunpack.c.l.s4 1966171168
        %v922 = vunpack.c.0.s8 %v921
        %v923 = vlaneseq
        %v924 = vshrl.u32 %v923, 7
        %v925 = vsub.s32 %v922, %v924
        %v926 = vrot.slane %v919, %v925
        %v928 = vsub.f32 %v756, %v926
        %v929 = vsub.f32 %v756, %v581
        %v930 = vmul.f32 %v401, %v929
        %v931 = vadd.f32 %v928, %v930
        %s932 = scalar_lea.vmem %s191, 3 [#allocation10]
        %933 = vst.msk [vmem:[%s932] ss:$8 sm:$0x3] %vm407, %v931
        %934 = vst.msk [vmem:[%s932] ss:$8 sm:$0x0] %vm407, %v931
        %v935 = vld [vmem:[#allocation2] sm:$0xff]
        %v936 = vld [vmem:[#allocation2 + $0x8] sm:$0xff]
        %v937 = vld [vmem:[#allocation2 + $0x10] sm:$0xff]
        %v938 = vld [vmem:[#allocation2 + $0x18] sm:$0xff]
        %v939 = vld [vmem:[#allocation2 + $0x20] sm:$0xff]
        %v940 = vld [vmem:[#allocation2 + $0x28] sm:$0xff]
        %v941 = vld [vmem:[#allocation2 + $0x30] sm:$0xff]
        %v942 = vld [vmem:[#allocation2 + $0x38] sm:$0xff]
        %v943 = vld [vmem:[#allocation2 + $0x40] sm:$0xff]
        %v944 = vld [vmem:[#allocation2 + $0x48] sm:$0xff]
        %v945 = vld [vmem:[#allocation2 + $0x50] sm:$0xff]
        %v946 = vld [vmem:[#allocation2 + $0x58] sm:$0xff]
        %v947 = vld [vmem:[#allocation2 + $0x60] sm:$0xff]
        %v948 = vld [vmem:[#allocation2 + $0x68] sm:$0xff]
        %v949 = vld [vmem:[#allocation2 + $0x70] sm:$0xff]
        %v950 = vld [vmem:[#allocation2 + $0x78] sm:$0xff]
        %v951 = vld [vmem:[#allocation2 + $0x80] sm:$0xff]
        %v952 = vld [vmem:[#allocation2 + $0x88] sm:$0xff]
        %v953 = vld [vmem:[#allocation2 + $0x90] sm:$0xff]
        %v954 = vld [vmem:[#allocation2 + $0x98] sm:$0xff]
        %v955 = vld [vmem:[#allocation2 + $0xa0] sm:$0xff]
        %v956 = vld [vmem:[#allocation2 + $0xa8] sm:$0xff]
        %v957 = vld [vmem:[#allocation2 + $0xb0] sm:$0xff]
        %v958 = vld [vmem:[#allocation2 + $0xb8] sm:$0xff]
        %v959 = vld [vmem:[#allocation2 + $0xc0] sm:$0xff]
        %v960 = vld [vmem:[#allocation2 + $0xc8] sm:$0xff]
        %v961 = vld [vmem:[#allocation2 + $0xd0] sm:$0xff]
        %v962 = vld [vmem:[#allocation2 + $0xd8] sm:$0xff]
        %v963 = vld [vmem:[#allocation2 + $0xe0] sm:$0xff]
        %v964 = vld [vmem:[#allocation2 + $0xe8] sm:$0xff]
        %v965 = vld [vmem:[#allocation2 + $0xf0] sm:$0xff]
        %v966 = vld [vmem:[#allocation2 + $0xf8] sm:$0xff]
        %v967 = vld [vmem:[#allocation2 + $0x100] sm:$0xff]
        %v968 = vld [vmem:[#allocation2 + $0x108] sm:$0xff]
        %v969 = vld [vmem:[#allocation2 + $0x110] sm:$0xff]
        %v970 = vld [vmem:[#allocation2 + $0x118] sm:$0xff]
        %v971 = vld [vmem:[#allocation2 + $0x120] sm:$0xff]
        %v972 = vld [vmem:[#allocation2 + $0x128] sm:$0xff]
        %v973 = vld [vmem:[#allocation2 + $0x130] sm:$0xff]
        %v974 = vld [vmem:[#allocation2 + $0x138] sm:$0xff]
        %v975 = vld [vmem:[#allocation2 + $0x140] sm:$0xff]
        %v976 = vld [vmem:[#allocation2 + $0x148] sm:$0xff]
        %v977 = vld [vmem:[#allocation2 + $0x150] sm:$0xff]
        %v978 = vld [vmem:[#allocation2 + $0x158] sm:$0xff]
        %v979 = vld [vmem:[#allocation2 + $0x160] sm:$0xff]
        %v980 = vld [vmem:[#allocation2 + $0x168] sm:$0xff]
        %v981 = vld [vmem:[#allocation2 + $0x170] sm:$0xff]
        %v982 = vld [vmem:[#allocation2 + $0x178] sm:$0xff]
        %v983 = vld [vmem:[#allocation2 + $0x180] sm:$0xff]
        %v984 = vld [vmem:[#allocation2 + $0x188] sm:$0xff]
        %v985 = vld [vmem:[#allocation2 + $0x190] sm:$0xff]
        %v986 = vld [vmem:[#allocation2 + $0x198] sm:$0xff]
        %v987 = vld [vmem:[#allocation2 + $0x1a0] sm:$0xff]
        %v988 = vld [vmem:[#allocation2 + $0x1a8] sm:$0xff]
        %v989 = vld [vmem:[#allocation2 + $0x1b0] sm:$0xff]
        %v990 = vld [vmem:[#allocation2 + $0x1b8] sm:$0xff]
        %v991 = vld [vmem:[#allocation2 + $0x1c0] sm:$0xff]
        %v992 = vld [vmem:[#allocation2 + $0x1c8] sm:$0xff]
        %v993 = vld [vmem:[#allocation2 + $0x1d0] sm:$0xff]
        %v994 = vld [vmem:[#allocation2 + $0x1d8] sm:$0xff]
        %v995 = vld [vmem:[#allocation2 + $0x1e0] sm:$0xff]
        %v996 = vld [vmem:[#allocation2 + $0x1e8] sm:$0xff]
        %v997 = vld [vmem:[#allocation2 + $0x1f0] sm:$0xff]
        %v998 = vld [vmem:[#allocation2 + $0x1f8] sm:$0xff]
        %v1000 = vlaneseq
        %v1001 = vshrl.u32 %v1000, 7
        %v1002 = vsub.s32 0, %v1001
        %v1003 = vrot.slane %v931, %v1002
        %v1004 = vlaneseq
        %v1005 = vshrl.u32 %v1004, 7
        %v1006 = vsub.s32 1, %v1005
        %v1007 = vrot.slane %v931, %v1006
        %1010 = vmatprep.subr.mxu0 %v966
        %1011 = vmatpush1.xpose.msra.mxu0 %v965
        %1012 = vmatprep.subr.mxu0 %v964
        %1013 = vmatpush1.xpose.msra.mxu0 %v963
        %1014 = vmatprep.subr.mxu0 %v962
        %1015 = vmatpush1.xpose.msra.mxu0 %v961
        %1016 = vmatprep.subr.mxu0 %v960
        %1017 = vmatpush1.xpose.msra.mxu0 %v959
        %1018 = vmatprep.subr.mxu0 %v958
        %1019 = vmatpush1.xpose.msra.mxu0 %v957
        %1020 = vmatprep.subr.mxu0 %v956
        %1021 = vmatpush1.xpose.msra.mxu0 %v955
        %1022 = vmatprep.subr.mxu0 %v954
        %1023 = vmatpush1.xpose.msra.mxu0 %v953
        %1024 = vmatprep.subr.mxu0 %v952
        %1025 = vmatpush1.xpose.msra.mxu0 %v951
        %1026 = vmatprep.subr.mxu0 %v950
        %1027 = vmatpush1.xpose.msra.mxu0 %v949
        %1028 = vmatprep.subr.mxu0 %v948
        %1029 = vmatpush1.xpose.msra.mxu0 %v947
        %1030 = vmatprep.subr.mxu0 %v946
        %1031 = vmatpush1.xpose.msra.mxu0 %v945
        %1032 = vmatprep.subr.mxu0 %v944
        %1033 = vmatpush1.xpose.msra.mxu0 %v943
        %1034 = vmatprep.subr.mxu0 %v942
        %1035 = vmatpush1.xpose.msra.mxu0 %v941
        %1036 = vmatprep.subr.mxu0 %v940
        %1037 = vmatpush1.xpose.msra.mxu0 %v939
        %1038 = vmatprep.subr.mxu0 %v938
        %1039 = vmatpush1.xpose.msra.mxu0 %v937
        %1040 = vmatprep.subr.mxu0 %v936
        %1041 = vmatpush1.xpose.msra.mxu0 %v935
        %1042 = vmatprep.subr.mxu0 %v998
        %1043 = vmatpush2.xpose.msra.mxu0 %v997
        %1044 = vmatprep.subr.mxu0 %v996
        %1045 = vmatpush2.xpose.msra.mxu0 %v995
        %1046 = vmatprep.subr.mxu0 %v994
        %1047 = vmatpush2.xpose.msra.mxu0 %v993
        %1048 = vmatprep.subr.mxu0 %v992
        %1049 = vmatpush2.xpose.msra.mxu0 %v991
        %1050 = vmatprep.subr.mxu0 %v990
        %1051 = vmatpush2.xpose.msra.mxu0 %v989
        %1052 = vmatprep.subr.mxu0 %v988
        %1053 = vmatpush2.xpose.msra.mxu0 %v987
        %1054 = vmatprep.subr.mxu0 %v986
        %1055 = vmatpush2.xpose.msra.mxu0 %v985
        %1056 = vmatprep.subr.mxu0 %v984
        %1057 = vmatpush2.xpose.msra.mxu0 %v983
        %1058 = vmatprep.subr.mxu0 %v982
        %1059 = vmatpush2.xpose.msra.mxu0 %v981
        %1060 = vmatprep.subr.mxu0 %v980
        %1061 = vmatpush2.xpose.msra.mxu0 %v979
        %1062 = vmatprep.subr.mxu0 %v978
        %1063 = vmatpush2.xpose.msra.mxu0 %v977
        %1064 = vmatprep.subr.mxu0 %v976
        %1065 = vmatpush2.xpose.msra.mxu0 %v975
        %1066 = vmatprep.subr.mxu0 %v974
        %1067 = vmatpush2.xpose.msra.mxu0 %v973
        %1068 = vmatprep.subr.mxu0 %v972
        %1069 = vmatpush2.xpose.msra.mxu0 %v971
        %1070 = vmatprep.subr.mxu0 %v970
        %1071 = vmatpush2.xpose.msra.mxu0 %v969
        %1072 = vmatprep.subr.mxu0 %v968
        %1073 = vmatpush2.xpose.msra.mxu0 %v967
        %1074 = vmatprep.mubr.f32.mxu0 %v1007
        %1075 = vmatmul.mubr.f32.gmra.mxu0 %v1003
        %v1076 = vpop.f32.mrf.mxu0
        %v1077 = vadd.f32 0.0, %v1076
        %v1078 = vpop.f32.mrf.mxu0
        %v1079 = vadd.f32 0.0, %v1078
        %1080 = vdwg.mxu0
        %v1081 = vsub.f32 %v1077, %v369
        %v1082 = vsub.f32 %v1079, %v373
        %v1083 = vmul.f32 %v378, %v1081
        %v1084 = vmul.f32 %v378, %v1082
        %v1087 = vcombine.low %v1083, %v1084
        %v1089 = vunpack.c.l.s4 1966171168
        %v1090 = vunpack.c.0.s8 %v1089
        %v1091 = vlaneseq
        %v1092 = vshrl.u32 %v1091, 7
        %v1093 = vsub.s32 %v1090, %v1092
        %v1094 = vrot.slane %v1087, %v1093
        %v1096 = vunpack.c.l.s4 1966171168
        %v1097 = vunpack.c.0.s8 %v1096
        %v1098 = vlaneseq
        %v1099 = vshrl.u32 %v1098, 7
        %v1100 = vsub.s32 %v1097, %v1099
        %v1101 = vrot.slane %v1094, %v1100
        %v1103 = vsub.f32 %v931, %v1101
        %v1104 = vsub.f32 %v931, %v756
        %v1105 = vmul.f32 %v401, %v1104
        %v1106 = vadd.f32 %v1103, %v1105
        %s1107 = scalar_lea.vmem %s191, 4 [#allocation10]
        %1108 = vst.msk [vmem:[%s1107] ss:$8 sm:$0x3] %vm407, %v1106
        %1109 = vst.msk [vmem:[%s1107] ss:$8 sm:$0x0] %vm407, %v1106
        %v1110 = vld [vmem:[#allocation2] sm:$0xff]
        %v1111 = vld [vmem:[#allocation2 + $0x8] sm:$0xff]
        %v1112 = vld [vmem:[#allocation2 + $0x10] sm:$0xff]
        %v1113 = vld [vmem:[#allocation2 + $0x18] sm:$0xff]
        %v1114 = vld [vmem:[#allocation2 + $0x20] sm:$0xff]
        %v1115 = vld [vmem:[#allocation2 + $0x28] sm:$0xff]
        %v1116 = vld [vmem:[#allocation2 + $0x30] sm:$0xff]
        %v1117 = vld [vmem:[#allocation2 + $0x38] sm:$0xff]
        %v1118 = vld [vmem:[#allocation2 + $0x40] sm:$0xff]
        %v1119 = vld [vmem:[#allocation2 + $0x48] sm:$0xff]
        %v1120 = vld [vmem:[#allocation2 + $0x50] sm:$0xff]
        %v1121 = vld [vmem:[#allocation2 + $0x58] sm:$0xff]
        %v1122 = vld [vmem:[#allocation2 + $0x60] sm:$0xff]
        %v1123 = vld [vmem:[#allocation2 + $0x68] sm:$0xff]
        %v1124 = vld [vmem:[#allocation2 + $0x70] sm:$0xff]
        %v1125 = vld [vmem:[#allocation2 + $0x78] sm:$0xff]
        %v1126 = vld [vmem:[#allocation2 + $0x80] sm:$0xff]
        %v1127 = vld [vmem:[#allocation2 + $0x88] sm:$0xff]
        %v1128 = vld [vmem:[#allocation2 + $0x90] sm:$0xff]
        %v1129 = vld [vmem:[#allocation2 + $0x98] sm:$0xff]
        %v1130 = vld [vmem:[#allocation2 + $0xa0] sm:$0xff]
        %v1131 = vld [vmem:[#allocation2 + $0xa8] sm:$0xff]
        %v1132 = vld [vmem:[#allocation2 + $0xb0] sm:$0xff]
        %v1133 = vld [vmem:[#allocation2 + $0xb8] sm:$0xff]
        %v1134 = vld [vmem:[#allocation2 + $0xc0] sm:$0xff]
        %v1135 = vld [vmem:[#allocation2 + $0xc8] sm:$0xff]
        %v1136 = vld [vmem:[#allocation2 + $0xd0] sm:$0xff]
        %v1137 = vld [vmem:[#allocation2 + $0xd8] sm:$0xff]
        %v1138 = vld [vmem:[#allocation2 + $0xe0] sm:$0xff]
        %v1139 = vld [vmem:[#allocation2 + $0xe8] sm:$0xff]
        %v1140 = vld [vmem:[#allocation2 + $0xf0] sm:$0xff]
        %v1141 = vld [vmem:[#allocation2 + $0xf8] sm:$0xff]
        %v1142 = vld [vmem:[#allocation2 + $0x100] sm:$0xff]
        %v1143 = vld [vmem:[#allocation2 + $0x108] sm:$0xff]
        %v1144 = vld [vmem:[#allocation2 + $0x110] sm:$0xff]
        %v1145 = vld [vmem:[#allocation2 + $0x118] sm:$0xff]
        %v1146 = vld [vmem:[#allocation2 + $0x120] sm:$0xff]
        %v1147 = vld [vmem:[#allocation2 + $0x128] sm:$0xff]
        %v1148 = vld [vmem:[#allocation2 + $0x130] sm:$0xff]
        %v1149 = vld [vmem:[#allocation2 + $0x138] sm:$0xff]
        %v1150 = vld [vmem:[#allocation2 + $0x140] sm:$0xff]
        %v1151 = vld [vmem:[#allocation2 + $0x148] sm:$0xff]
        %v1152 = vld [vmem:[#allocation2 + $0x150] sm:$0xff]
        %v1153 = vld [vmem:[#allocation2 + $0x158] sm:$0xff]
        %v1154 = vld [vmem:[#allocation2 + $0x160] sm:$0xff]
        %v1155 = vld [vmem:[#allocation2 + $0x168] sm:$0xff]
        %v1156 = vld [vmem:[#allocation2 + $0x170] sm:$0xff]
        %v1157 = vld [vmem:[#allocation2 + $0x178] sm:$0xff]
        %v1158 = vld [vmem:[#allocation2 + $0x180] sm:$0xff]
        %v1159 = vld [vmem:[#allocation2 + $0x188] sm:$0xff]
        %v1160 = vld [vmem:[#allocation2 + $0x190] sm:$0xff]
        %v1161 = vld [vmem:[#allocation2 + $0x198] sm:$0xff]
        %v1162 = vld [vmem:[#allocation2 + $0x1a0] sm:$0xff]
        %v1163 = vld [vmem:[#allocation2 + $0x1a8] sm:$0xff]
        %v1164 = vld [vmem:[#allocation2 + $0x1b0] sm:$0xff]
        %v1165 = vld [vmem:[#allocation2 + $0x1b8] sm:$0xff]
        %v1166 = vld [vmem:[#allocation2 + $0x1c0] sm:$0xff]
        %v1167 = vld [vmem:[#allocation2 + $0x1c8] sm:$0xff]
        %v1168 = vld [vmem:[#allocation2 + $0x1d0] sm:$0xff]
        %v1169 = vld [vmem:[#allocation2 + $0x1d8] sm:$0xff]
        %v1170 = vld [vmem:[#allocation2 + $0x1e0] sm:$0xff]
        %v1171 = vld [vmem:[#allocation2 + $0x1e8] sm:$0xff]
        %v1172 = vld [vmem:[#allocation2 + $0x1f0] sm:$0xff]
        %v1173 = vld [vmem:[#allocation2 + $0x1f8] sm:$0xff]
        %v1175 = vlaneseq
        %v1176 = vshrl.u32 %v1175, 7
        %v1177 = vsub.s32 0, %v1176
        %v1178 = vrot.slane %v1106, %v1177
        %v1179 = vlaneseq
        %v1180 = vshrl.u32 %v1179, 7
        %v1181 = vsub.s32 1, %v1180
        %v1182 = vrot.slane %v1106, %v1181
        %1185 = vmatprep.subr.mxu0 %v1141
        %1186 = vmatpush1.xpose.msra.mxu0 %v1140
        %1187 = vmatprep.subr.mxu0 %v1139
        %1188 = vmatpush1.xpose.msra.mxu0 %v1138
        %1189 = vmatprep.subr.mxu0 %v1137
        %1190 = vmatpush1.xpose.msra.mxu0 %v1136
        %1191 = vmatprep.subr.mxu0 %v1135
        %1192 = vmatpush1.xpose.msra.mxu0 %v1134
        %1193 = vmatprep.subr.mxu0 %v1133
        %1194 = vmatpush1.xpose.msra.mxu0 %v1132
        %1195 = vmatprep.subr.mxu0 %v1131
        %1196 = vmatpush1.xpose.msra.mxu0 %v1130
        %1197 = vmatprep.subr.mxu0 %v1129
        %1198 = vmatpush1.xpose.msra.mxu0 %v1128
        %1199 = vmatprep.subr.mxu0 %v1127
        %1200 = vmatpush1.xpose.msra.mxu0 %v1126
        %1201 = vmatprep.subr.mxu0 %v1125
        %1202 = vmatpush1.xpose.msra.mxu0 %v1124
        %1203 = vmatprep.subr.mxu0 %v1123
        %1204 = vmatpush1.xpose.msra.mxu0 %v1122
        %1205 = vmatprep.subr.mxu0 %v1121
        %1206 = vmatpush1.xpose.msra.mxu0 %v1120
        %1207 = vmatprep.subr.mxu0 %v1119
        %1208 = vmatpush1.xpose.msra.mxu0 %v1118
        %1209 = vmatprep.subr.mxu0 %v1117
        %1210 = vmatpush1.xpose.msra.mxu0 %v1116
        %1211 = vmatprep.subr.mxu0 %v1115
        %1212 = vmatpush1.xpose.msra.mxu0 %v1114
        %1213 = vmatprep.subr.mxu0 %v1113
        %1214 = vmatpush1.xpose.msra.mxu0 %v1112
        %1215 = vmatprep.subr.mxu0 %v1111
        %1216 = vmatpush1.xpose.msra.mxu0 %v1110
        %1217 = vmatprep.subr.mxu0 %v1173
        %1218 = vmatpush2.xpose.msra.mxu0 %v1172
        %1219 = vmatprep.subr.mxu0 %v1171
        %1220 = vmatpush2.xpose.msra.mxu0 %v1170
        %1221 = vmatprep.subr.mxu0 %v1169
        %1222 = vmatpush2.xpose.msra.mxu0 %v1168
        %1223 = vmatprep.subr.mxu0 %v1167
        %1224 = vmatpush2.xpose.msra.mxu0 %v1166
        %1225 = vmatprep.subr.mxu0 %v1165
        %1226 = vmatpush2.xpose.msra.mxu0 %v1164
        %1227 = vmatprep.subr.mxu0 %v1163
        %1228 = vmatpush2.xpose.msra.mxu0 %v1162
        %1229 = vmatprep.subr.mxu0 %v1161
        %1230 = vmatpush2.xpose.msra.mxu0 %v1160
        %1231 = vmatprep.subr.mxu0 %v1159
        %1232 = vmatpush2.xpose.msra.mxu0 %v1158
        %1233 = vmatprep.subr.mxu0 %v1157
        %1234 = vmatpush2.xpose.msra.mxu0 %v1156
        %1235 = vmatprep.subr.mxu0 %v1155
        %1236 = vmatpush2.xpose.msra.mxu0 %v1154
        %1237 = vmatprep.subr.mxu0 %v1153
        %1238 = vmatpush2.xpose.msra.mxu0 %v1152
        %1239 = vmatprep.subr.mxu0 %v1151
        %1240 = vmatpush2.xpose.msra.mxu0 %v1150
        %1241 = vmatprep.subr.mxu0 %v1149
        %1242 = vmatpush2.xpose.msra.mxu0 %v1148
        %1243 = vmatprep.subr.mxu0 %v1147
        %1244 = vmatpush2.xpose.msra.mxu0 %v1146
        %1245 = vmatprep.subr.mxu0 %v1145
        %1246 = vmatpush2.xpose.msra.mxu0 %v1144
        %1247 = vmatprep.subr.mxu0 %v1143
        %1248 = vmatpush2.xpose.msra.mxu0 %v1142
        %1249 = vmatprep.mubr.f32.mxu0 %v1182
        %1250 = vmatmul.mubr.f32.gmra.mxu0 %v1178
        %v1251 = vpop.f32.mrf.mxu0
        %v1252 = vadd.f32 0.0, %v1251
        %v1253 = vpop.f32.mrf.mxu0
        %v1254 = vadd.f32 0.0, %v1253
        %1255 = vdwg.mxu0
        %v1256 = vsub.f32 %v1252, %v369
        %v1257 = vsub.f32 %v1254, %v373
        %v1258 = vmul.f32 %v378, %v1256
        %v1259 = vmul.f32 %v378, %v1257
        %v1262 = vcombine.low %v1258, %v1259
        %v1264 = vunpack.c.l.s4 1966171168
        %v1265 = vunpack.c.0.s8 %v1264
        %v1266 = vlaneseq
        %v1267 = vshrl.u32 %v1266, 7
        %v1268 = vsub.s32 %v1265, %v1267
        %v1269 = vrot.slane %v1262, %v1268
        %v1271 = vunpack.c.l.s4 1966171168
        %v1272 = vunpack.c.0.s8 %v1271
        %v1273 = vlaneseq
        %v1274 = vshrl.u32 %v1273, 7
        %v1275 = vsub.s32 %v1272, %v1274
        %v1276 = vrot.slane %v1269, %v1275
        %v1278 = vsub.f32 %v1106, %v1276
        %v1279 = vsub.f32 %v1106, %v931
        %v1280 = vmul.f32 %v401, %v1279
        %v1281 = vadd.f32 %v1278, %v1280
        %s1282 = scalar_lea.vmem %s191, 5 [#allocation10]
        %1283 = vst.msk [vmem:[%s1282] ss:$8 sm:$0x3] %vm407, %v1281
        %1284 = vst.msk [vmem:[%s1282] ss:$8 sm:$0x0] %vm407, %v1281
        %v1285 = vld [vmem:[#allocation2] sm:$0xff]
        %v1286 = vld [vmem:[#allocation2 + $0x8] sm:$0xff]
        %v1287 = vld [vmem:[#allocation2 + $0x10] sm:$0xff]
        %v1288 = vld [vmem:[#allocation2 + $0x18] sm:$0xff]
        %v1289 = vld [vmem:[#allocation2 + $0x20] sm:$0xff]
        %v1290 = vld [vmem:[#allocation2 + $0x28] sm:$0xff]
        %v1291 = vld [vmem:[#allocation2 + $0x30] sm:$0xff]
        %v1292 = vld [vmem:[#allocation2 + $0x38] sm:$0xff]
        %v1293 = vld [vmem:[#allocation2 + $0x40] sm:$0xff]
        %v1294 = vld [vmem:[#allocation2 + $0x48] sm:$0xff]
        %v1295 = vld [vmem:[#allocation2 + $0x50] sm:$0xff]
        %v1296 = vld [vmem:[#allocation2 + $0x58] sm:$0xff]
        %v1297 = vld [vmem:[#allocation2 + $0x60] sm:$0xff]
        %v1298 = vld [vmem:[#allocation2 + $0x68] sm:$0xff]
        %v1299 = vld [vmem:[#allocation2 + $0x70] sm:$0xff]
        %v1300 = vld [vmem:[#allocation2 + $0x78] sm:$0xff]
        %v1301 = vld [vmem:[#allocation2 + $0x80] sm:$0xff]
        %v1302 = vld [vmem:[#allocation2 + $0x88] sm:$0xff]
        %v1303 = vld [vmem:[#allocation2 + $0x90] sm:$0xff]
        %v1304 = vld [vmem:[#allocation2 + $0x98] sm:$0xff]
        %v1305 = vld [vmem:[#allocation2 + $0xa0] sm:$0xff]
        %v1306 = vld [vmem:[#allocation2 + $0xa8] sm:$0xff]
        %v1307 = vld [vmem:[#allocation2 + $0xb0] sm:$0xff]
        %v1308 = vld [vmem:[#allocation2 + $0xb8] sm:$0xff]
        %v1309 = vld [vmem:[#allocation2 + $0xc0] sm:$0xff]
        %v1310 = vld [vmem:[#allocation2 + $0xc8] sm:$0xff]
        %v1311 = vld [vmem:[#allocation2 + $0xd0] sm:$0xff]
        %v1312 = vld [vmem:[#allocation2 + $0xd8] sm:$0xff]
        %v1313 = vld [vmem:[#allocation2 + $0xe0] sm:$0xff]
        %v1314 = vld [vmem:[#allocation2 + $0xe8] sm:$0xff]
        %v1315 = vld [vmem:[#allocation2 + $0xf0] sm:$0xff]
        %v1316 = vld [vmem:[#allocation2 + $0xf8] sm:$0xff]
        %v1317 = vld [vmem:[#allocation2 + $0x100] sm:$0xff]
        %v1318 = vld [vmem:[#allocation2 + $0x108] sm:$0xff]
        %v1319 = vld [vmem:[#allocation2 + $0x110] sm:$0xff]
        %v1320 = vld [vmem:[#allocation2 + $0x118] sm:$0xff]
        %v1321 = vld [vmem:[#allocation2 + $0x120] sm:$0xff]
        %v1322 = vld [vmem:[#allocation2 + $0x128] sm:$0xff]
        %v1323 = vld [vmem:[#allocation2 + $0x130] sm:$0xff]
        %v1324 = vld [vmem:[#allocation2 + $0x138] sm:$0xff]
        %v1325 = vld [vmem:[#allocation2 + $0x140] sm:$0xff]
        %v1326 = vld [vmem:[#allocation2 + $0x148] sm:$0xff]
        %v1327 = vld [vmem:[#allocation2 + $0x150] sm:$0xff]
        %v1328 = vld [vmem:[#allocation2 + $0x158] sm:$0xff]
        %v1329 = vld [vmem:[#allocation2 + $0x160] sm:$0xff]
        %v1330 = vld [vmem:[#allocation2 + $0x168] sm:$0xff]
        %v1331 = vld [vmem:[#allocation2 + $0x170] sm:$0xff]
        %v1332 = vld [vmem:[#allocation2 + $0x178] sm:$0xff]
        %v1333 = vld [vmem:[#allocation2 + $0x180] sm:$0xff]
        %v1334 = vld [vmem:[#allocation2 + $0x188] sm:$0xff]
        %v1335 = vld [vmem:[#allocation2 + $0x190] sm:$0xff]
        %v1336 = vld [vmem:[#allocation2 + $0x198] sm:$0xff]
        %v1337 = vld [vmem:[#allocation2 + $0x1a0] sm:$0xff]
        %v1338 = vld [vmem:[#allocation2 + $0x1a8] sm:$0xff]
        %v1339 = vld [vmem:[#allocation2 + $0x1b0] sm:$0xff]
        %v1340 = vld [vmem:[#allocation2 + $0x1b8] sm:$0xff]
        %v1341 = vld [vmem:[#allocation2 + $0x1c0] sm:$0xff]
        %v1342 = vld [vmem:[#allocation2 + $0x1c8] sm:$0xff]
        %v1343 = vld [vmem:[#allocation2 + $0x1d0] sm:$0xff]
        %v1344 = vld [vmem:[#allocation2 + $0x1d8] sm:$0xff]
        %v1345 = vld [vmem:[#allocation2 + $0x1e0] sm:$0xff]
        %v1346 = vld [vmem:[#allocation2 + $0x1e8] sm:$0xff]
        %v1347 = vld [vmem:[#allocation2 + $0x1f0] sm:$0xff]
        %v1348 = vld [vmem:[#allocation2 + $0x1f8] sm:$0xff]
        %v1350 = vlaneseq
        %v1351 = vshrl.u32 %v1350, 7
        %v1352 = vsub.s32 0, %v1351
        %v1353 = vrot.slane %v1281, %v1352
        %v1354 = vlaneseq
        %v1355 = vshrl.u32 %v1354, 7
        %v1356 = vsub.s32 1, %v1355
        %v1357 = vrot.slane %v1281, %v1356
        %1360 = vmatprep.subr.mxu0 %v1316
        %1361 = vmatpush1.xpose.msra.mxu0 %v1315
        %1362 = vmatprep.subr.mxu0 %v1314
        %1363 = vmatpush1.xpose.msra.mxu0 %v1313
        %1364 = vmatprep.subr.mxu0 %v1312
        %1365 = vmatpush1.xpose.msra.mxu0 %v1311
        %1366 = vmatprep.subr.mxu0 %v1310
        %1367 = vmatpush1.xpose.msra.mxu0 %v1309
        %1368 = vmatprep.subr.mxu0 %v1308
        %1369 = vmatpush1.xpose.msra.mxu0 %v1307
        %1370 = vmatprep.subr.mxu0 %v1306
        %1371 = vmatpush1.xpose.msra.mxu0 %v1305
        %1372 = vmatprep.subr.mxu0 %v1304
        %1373 = vmatpush1.xpose.msra.mxu0 %v1303
        %1374 = vmatprep.subr.mxu0 %v1302
        %1375 = vmatpush1.xpose.msra.mxu0 %v1301
        %1376 = vmatprep.subr.mxu0 %v1300
        %1377 = vmatpush1.xpose.msra.mxu0 %v1299
        %1378 = vmatprep.subr.mxu0 %v1298
        %1379 = vmatpush1.xpose.msra.mxu0 %v1297
        %1380 = vmatprep.subr.mxu0 %v1296
        %1381 = vmatpush1.xpose.msra.mxu0 %v1295
        %1382 = vmatprep.subr.mxu0 %v1294
        %1383 = vmatpush1.xpose.msra.mxu0 %v1293
        %1384 = vmatprep.subr.mxu0 %v1292
        %1385 = vmatpush1.xpose.msra.mxu0 %v1291
        %1386 = vmatprep.subr.mxu0 %v1290
        %1387 = vmatpush1.xpose.msra.mxu0 %v1289
        %1388 = vmatprep.subr.mxu0 %v1288
        %1389 = vmatpush1.xpose.msra.mxu0 %v1287
        %1390 = vmatprep.subr.mxu0 %v1286
        %1391 = vmatpush1.xpose.msra.mxu0 %v1285
        %1392 = vmatprep.subr.mxu0 %v1348
        %1393 = vmatpush2.xpose.msra.mxu0 %v1347
        %1394 = vmatprep.subr.mxu0 %v1346
        %1395 = vmatpush2.xpose.msra.mxu0 %v1345
        %1396 = vmatprep.subr.mxu0 %v1344
        %1397 = vmatpush2.xpose.msra.mxu0 %v1343
        %1398 = vmatprep.subr.mxu0 %v1342
        %1399 = vmatpush2.xpose.msra.mxu0 %v1341
        %1400 = vmatprep.subr.mxu0 %v1340
        %1401 = vmatpush2.xpose.msra.mxu0 %v1339
        %1402 = vmatprep.subr.mxu0 %v1338
        %1403 = vmatpush2.xpose.msra.mxu0 %v1337
        %1404 = vmatprep.subr.mxu0 %v1336
        %1405 = vmatpush2.xpose.msra.mxu0 %v1335
        %1406 = vmatprep.subr.mxu0 %v1334
        %1407 = vmatpush2.xpose.msra.mxu0 %v1333
        %1408 = vmatprep.subr.mxu0 %v1332
        %1409 = vmatpush2.xpose.msra.mxu0 %v1331
        %1410 = vmatprep.subr.mxu0 %v1330
        %1411 = vmatpush2.xpose.msra.mxu0 %v1329
        %1412 = vmatprep.subr.mxu0 %v1328
        %1413 = vmatpush2.xpose.msra.mxu0 %v1327
        %1414 = vmatprep.subr.mxu0 %v1326
        %1415 = vmatpush2.xpose.msra.mxu0 %v1325
        %1416 = vmatprep.subr.mxu0 %v1324
        %1417 = vmatpush2.xpose.msra.mxu0 %v1323
        %1418 = vmatprep.subr.mxu0 %v1322
        %1419 = vmatpush2.xpose.msra.mxu0 %v1321
        %1420 = vmatprep.subr.mxu0 %v1320
        %1421 = vmatpush2.xpose.msra.mxu0 %v1319
        %1422 = vmatprep.subr.mxu0 %v1318
        %1423 = vmatpush2.xpose.msra.mxu0 %v1317
        %1424 = vmatprep.mubr.f32.mxu0 %v1357
        %1425 = vmatmul.mubr.f32.gmra.mxu0 %v1353
        %v1426 = vpop.f32.mrf.mxu0
        %v1427 = vadd.f32 0.0, %v1426
        %v1428 = vpop.f32.mrf.mxu0
        %v1429 = vadd.f32 0.0, %v1428
        %1430 = vdwg.mxu0
        %v1431 = vsub.f32 %v1427, %v369
        %v1432 = vsub.f32 %v1429, %v373
        %v1433 = vmul.f32 %v378, %v1431
        %v1434 = vmul.f32 %v378, %v1432
        %v1437 = vcombine.low %v1433, %v1434
        %v1439 = vunpack.c.l.s4 1966171168
        %v1440 = vunpack.c.0.s8 %v1439
        %v1441 = vlaneseq
        %v1442 = vshrl.u32 %v1441, 7
        %v1443 = vsub.s32 %v1440, %v1442
        %v1444 = vrot.slane %v1437, %v1443
        %v1446 = vunpack.c.l.s4 1966171168
        %v1447 = vunpack.c.0.s8 %v1446
        %v1448 = vlaneseq
        %v1449 = vshrl.u32 %v1448, 7
        %v1450 = vsub.s32 %v1447, %v1449
        %v1451 = vrot.slane %v1444, %v1450
        %v1453 = vsub.f32 %v1281, %v1451
        %v1454 = vsub.f32 %v1281, %v1106
        %v1455 = vmul.f32 %v401, %v1454
        %v1456 = vadd.f32 %v1453, %v1455
        %s1457 = scalar_lea.vmem %s191, 6 [#allocation10]
        %1458 = vst.msk [vmem:[%s1457] ss:$8 sm:$0x3] %vm407, %v1456
        %1459 = vst.msk [vmem:[%s1457] ss:$8 sm:$0x0] %vm407, %v1456
        %v1460 = vld [vmem:[#allocation2] sm:$0xff]
        %v1461 = vld [vmem:[#allocation2 + $0x8] sm:$0xff]
        %v1462 = vld [vmem:[#allocation2 + $0x10] sm:$0xff]
        %v1463 = vld [vmem:[#allocation2 + $0x18] sm:$0xff]
        %v1464 = vld [vmem:[#allocation2 + $0x20] sm:$0xff]
        %v1465 = vld [vmem:[#allocation2 + $0x28] sm:$0xff]
        %v1466 = vld [vmem:[#allocation2 + $0x30] sm:$0xff]
        %v1467 = vld [vmem:[#allocation2 + $0x38] sm:$0xff]
        %v1468 = vld [vmem:[#allocation2 + $0x40] sm:$0xff]
        %v1469 = vld [vmem:[#allocation2 + $0x48] sm:$0xff]
        %v1470 = vld [vmem:[#allocation2 + $0x50] sm:$0xff]
        %v1471 = vld [vmem:[#allocation2 + $0x58] sm:$0xff]
        %v1472 = vld [vmem:[#allocation2 + $0x60] sm:$0xff]
        %v1473 = vld [vmem:[#allocation2 + $0x68] sm:$0xff]
        %v1474 = vld [vmem:[#allocation2 + $0x70] sm:$0xff]
        %v1475 = vld [vmem:[#allocation2 + $0x78] sm:$0xff]
        %v1476 = vld [vmem:[#allocation2 + $0x80] sm:$0xff]
        %v1477 = vld [vmem:[#allocation2 + $0x88] sm:$0xff]
        %v1478 = vld [vmem:[#allocation2 + $0x90] sm:$0xff]
        %v1479 = vld [vmem:[#allocation2 + $0x98] sm:$0xff]
        %v1480 = vld [vmem:[#allocation2 + $0xa0] sm:$0xff]
        %v1481 = vld [vmem:[#allocation2 + $0xa8] sm:$0xff]
        %v1482 = vld [vmem:[#allocation2 + $0xb0] sm:$0xff]
        %v1483 = vld [vmem:[#allocation2 + $0xb8] sm:$0xff]
        %v1484 = vld [vmem:[#allocation2 + $0xc0] sm:$0xff]
        %v1485 = vld [vmem:[#allocation2 + $0xc8] sm:$0xff]
        %v1486 = vld [vmem:[#allocation2 + $0xd0] sm:$0xff]
        %v1487 = vld [vmem:[#allocation2 + $0xd8] sm:$0xff]
        %v1488 = vld [vmem:[#allocation2 + $0xe0] sm:$0xff]
        %v1489 = vld [vmem:[#allocation2 + $0xe8] sm:$0xff]
        %v1490 = vld [vmem:[#allocation2 + $0xf0] sm:$0xff]
        %v1491 = vld [vmem:[#allocation2 + $0xf8] sm:$0xff]
        %v1492 = vld [vmem:[#allocation2 + $0x100] sm:$0xff]
        %v1493 = vld [vmem:[#allocation2 + $0x108] sm:$0xff]
        %v1494 = vld [vmem:[#allocation2 + $0x110] sm:$0xff]
        %v1495 = vld [vmem:[#allocation2 + $0x118] sm:$0xff]
        %v1496 = vld [vmem:[#allocation2 + $0x120] sm:$0xff]
        %v1497 = vld [vmem:[#allocation2 + $0x128] sm:$0xff]
        %v1498 = vld [vmem:[#allocation2 + $0x130] sm:$0xff]
        %v1499 = vld [vmem:[#allocation2 + $0x138] sm:$0xff]
        %v1500 = vld [vmem:[#allocation2 + $0x140] sm:$0xff]
        %v1501 = vld [vmem:[#allocation2 + $0x148] sm:$0xff]
        %v1502 = vld [vmem:[#allocation2 + $0x150] sm:$0xff]
        %v1503 = vld [vmem:[#allocation2 + $0x158] sm:$0xff]
        %v1504 = vld [vmem:[#allocation2 + $0x160] sm:$0xff]
        %v1505 = vld [vmem:[#allocation2 + $0x168] sm:$0xff]
        %v1506 = vld [vmem:[#allocation2 + $0x170] sm:$0xff]
        %v1507 = vld [vmem:[#allocation2 + $0x178] sm:$0xff]
        %v1508 = vld [vmem:[#allocation2 + $0x180] sm:$0xff]
        %v1509 = vld [vmem:[#allocation2 + $0x188] sm:$0xff]
        %v1510 = vld [vmem:[#allocation2 + $0x190] sm:$0xff]
        %v1511 = vld [vmem:[#allocation2 + $0x198] sm:$0xff]
        %v1512 = vld [vmem:[#allocation2 + $0x1a0] sm:$0xff]
        %v1513 = vld [vmem:[#allocation2 + $0x1a8] sm:$0xff]
        %v1514 = vld [vmem:[#allocation2 + $0x1b0] sm:$0xff]
        %v1515 = vld [vmem:[#allocation2 + $0x1b8] sm:$0xff]
        %v1516 = vld [vmem:[#allocation2 + $0x1c0] sm:$0xff]
        %v1517 = vld [vmem:[#allocation2 + $0x1c8] sm:$0xff]
        %v1518 = vld [vmem:[#allocation2 + $0x1d0] sm:$0xff]
        %v1519 = vld [vmem:[#allocation2 + $0x1d8] sm:$0xff]
        %v1520 = vld [vmem:[#allocation2 + $0x1e0] sm:$0xff]
        %v1521 = vld [vmem:[#allocation2 + $0x1e8] sm:$0xff]
        %v1522 = vld [vmem:[#allocation2 + $0x1f0] sm:$0xff]
        %v1523 = vld [vmem:[#allocation2 + $0x1f8] sm:$0xff]
        %v1525 = vlaneseq
        %v1526 = vshrl.u32 %v1525, 7
        %v1527 = vsub.s32 0, %v1526
        %v1528 = vrot.slane %v1456, %v1527
        %v1529 = vlaneseq
        %v1530 = vshrl.u32 %v1529, 7
        %v1531 = vsub.s32 1, %v1530
        %v1532 = vrot.slane %v1456, %v1531
        %1535 = vmatprep.subr.mxu0 %v1491
        %1536 = vmatpush1.xpose.msra.mxu0 %v1490
        %1537 = vmatprep.subr.mxu0 %v1489
        %1538 = vmatpush1.xpose.msra.mxu0 %v1488
        %1539 = vmatprep.subr.mxu0 %v1487
        %1540 = vmatpush1.xpose.msra.mxu0 %v1486
        %1541 = vmatprep.subr.mxu0 %v1485
        %1542 = vmatpush1.xpose.msra.mxu0 %v1484
        %1543 = vmatprep.subr.mxu0 %v1483
        %1544 = vmatpush1.xpose.msra.mxu0 %v1482
        %1545 = vmatprep.subr.mxu0 %v1481
        %1546 = vmatpush1.xpose.msra.mxu0 %v1480
        %1547 = vmatprep.subr.mxu0 %v1479
        %1548 = vmatpush1.xpose.msra.mxu0 %v1478
        %1549 = vmatprep.subr.mxu0 %v1477
        %1550 = vmatpush1.xpose.msra.mxu0 %v1476
        %1551 = vmatprep.subr.mxu0 %v1475
        %1552 = vmatpush1.xpose.msra.mxu0 %v1474
        %1553 = vmatprep.subr.mxu0 %v1473
        %1554 = vmatpush1.xpose.msra.mxu0 %v1472
        %1555 = vmatprep.subr.mxu0 %v1471
        %1556 = vmatpush1.xpose.msra.mxu0 %v1470
        %1557 = vmatprep.subr.mxu0 %v1469
        %1558 = vmatpush1.xpose.msra.mxu0 %v1468
        %1559 = vmatprep.subr.mxu0 %v1467
        %1560 = vmatpush1.xpose.msra.mxu0 %v1466
        %1561 = vmatprep.subr.mxu0 %v1465
        %1562 = vmatpush1.xpose.msra.mxu0 %v1464
        %1563 = vmatprep.subr.mxu0 %v1463
        %1564 = vmatpush1.xpose.msra.mxu0 %v1462
        %1565 = vmatprep.subr.mxu0 %v1461
        %1566 = vmatpush1.xpose.msra.mxu0 %v1460
        %1567 = vmatprep.subr.mxu0 %v1523
        %1568 = vmatpush2.xpose.msra.mxu0 %v1522
        %1569 = vmatprep.subr.mxu0 %v1521
        %1570 = vmatpush2.xpose.msra.mxu0 %v1520
        %1571 = vmatprep.subr.mxu0 %v1519
        %1572 = vmatpush2.xpose.msra.mxu0 %v1518
        %1573 = vmatprep.subr.mxu0 %v1517
        %1574 = vmatpush2.xpose.msra.mxu0 %v1516
        %1575 = vmatprep.subr.mxu0 %v1515
        %1576 = vmatpush2.xpose.msra.mxu0 %v1514
        %1577 = vmatprep.subr.mxu0 %v1513
        %1578 = vmatpush2.xpose.msra.mxu0 %v1512
        %1579 = vmatprep.subr.mxu0 %v1511
        %1580 = vmatpush2.xpose.msra.mxu0 %v1510
        %1581 = vmatprep.subr.mxu0 %v1509
        %1582 = vmatpush2.xpose.msra.mxu0 %v1508
        %1583 = vmatprep.subr.mxu0 %v1507
        %1584 = vmatpush2.xpose.msra.mxu0 %v1506
        %1585 = vmatprep.subr.mxu0 %v1505
        %1586 = vmatpush2.xpose.msra.mxu0 %v1504
        %1587 = vmatprep.subr.mxu0 %v1503
        %1588 = vmatpush2.xpose.msra.mxu0 %v1502
        %1589 = vmatprep.subr.mxu0 %v1501
        %1590 = vmatpush2.xpose.msra.mxu0 %v1500
        %1591 = vmatprep.subr.mxu0 %v1499
        %1592 = vmatpush2.xpose.msra.mxu0 %v1498
        %1593 = vmatprep.subr.mxu0 %v1497
        %1594 = vmatpush2.xpose.msra.mxu0 %v1496
        %1595 = vmatprep.subr.mxu0 %v1495
        %1596 = vmatpush2.xpose.msra.mxu0 %v1494
        %1597 = vmatprep.subr.mxu0 %v1493
        %1598 = vmatpush2.xpose.msra.mxu0 %v1492
        %1599 = vmatprep.mubr.f32.mxu0 %v1532
        %1600 = vmatmul.mubr.f32.gmra.mxu0 %v1528
        %v1601 = vpop.f32.mrf.mxu0
        %v1602 = vadd.f32 0.0, %v1601
        %v1603 = vpop.f32.mrf.mxu0
        %v1604 = vadd.f32 0.0, %v1603
        %1605 = vdwg.mxu0
        %v1606 = vsub.f32 %v1602, %v369
        %v1607 = vsub.f32 %v1604, %v373
        %v1608 = vmul.f32 %v378, %v1606
        %v1609 = vmul.f32 %v378, %v1607
        %v1612 = vcombine.low %v1608, %v1609
        %v1614 = vunpack.c.l.s4 1966171168
        %v1615 = vunpack.c.0.s8 %v1614
        %v1616 = vlaneseq
        %v1617 = vshrl.u32 %v1616, 7
        %v1618 = vsub.s32 %v1615, %v1617
        %v1619 = vrot.slane %v1612, %v1618
        %v1621 = vunpack.c.l.s4 1966171168
        %v1622 = vunpack.c.0.s8 %v1621
        %v1623 = vlaneseq
        %v1624 = vshrl.u32 %v1623, 7
        %v1625 = vsub.s32 %v1622, %v1624
        %v1626 = vrot.slane %v1619, %v1625
        %v1628 = vsub.f32 %v1456, %v1626
        %v1629 = vsub.f32 %v1456, %v1281
        %v1630 = vmul.f32 %v401, %v1629
        %v1631 = vadd.f32 %v1628, %v1630
        %s1632 = scalar_lea.vmem %s191, 7 [#allocation10]
        %1633 = vst.msk [vmem:[%s1632] ss:$8 sm:$0x3] %vm407, %v1631
        %1634 = vst.msk [vmem:[%s1632] ss:$8 sm:$0x0] %vm407, %v1631
        %1635 = vst.msk [vmem:[#allocation4] ss:$2 sm:$0x3] %vm407, %v1456
        %1636 = vst.msk [vmem:[%s217] ss:$2 sm:$0x3] %vm407, %v1631
        %s1637 = sand.u32 %s114, 1
        %s1638 = scalar_lea.sflag [#allocation9], %s1637
        %s1639 = sand.u32 %s114, 1
        %s1640 = smul.addr %s1639, 16
        %s1641 = scalar_lea.vmem [#allocation10], %s1640
        // Predicated region
        $region49: #{tpu_custom_call.1} parent=35 // pred_check
          %p1642 = pneg %p124
        $region50: #{tpu_custom_call.1} parent=35 // pred_check_branch
          %1644 = sbr.rel (%p1642) target = $region52
        $region51: #{tpu_custom_call.1} parent=35 // pred_region
          %s1646 = ssub.s32 256, 256
          %1647 = vsyncadd %s1638, %s1646
          %s1648 = smul.addr %s22, 2
          %s1649 = smul.addr %s1648, 128
          %s1650 = scalar_lea.hbm %s5, %s1649
          %s1652 = sshll.u32 %s1641, 4
          %s1653 = int_to_ptr.vmem [resolvable:$true] %s1652
          %1655 = dma.vmem_to_hbm [thread:$0]  %s1653, 256, %s1650, %s1638
        $region52: #{tpu_custom_call.1} parent=35 // pred_fallthru
          _
      $region36: #{tpu_custom_call.1} parent=5 // pred_fallthru
        _
      %p1656 = scmp.le.s32.totalorder 2, %s17
      // Predicated region
      $region53: #{tpu_custom_call.1} parent=5 // pred_check
        %p1657 = pneg %p1656
      $region54: #{tpu_custom_call.1} parent=5 // pred_check_branch
        %1659 = sbr.rel (%p1657) target = $region56
      $region55: #{tpu_custom_call.1} parent=5 // pred_region
        %s1660 = ssub.s32 %s17, 2
        // Predicated region
        $region57: #{tpu_custom_call.1} parent=55 // pred_check
          %p1661 = pneg %p130
        $region58: #{tpu_custom_call.1} parent=55 // pred_check_branch
          %1663 = sbr.rel (%p1661) target = $region60
        $region59: #{tpu_custom_call.1} parent=55 // pred_region
          %s1664 = sand.u32 %s115, 1
          %s1665 = scalar_lea.sflag [#allocation9], %s1664
          %s1666 = sand.u32 %s115, 1
          %s1667 = smul.addr %s1666, 16
          %s1668 = scalar_lea.vmem [#allocation10], %s1667
          %1669 = dma.done %s1665, 256
        $region60: #{tpu_custom_call.1} parent=55 // pred_fallthru
          _
      $region56: #{tpu_custom_call.1} parent=5 // pred_fallthru
        _
    $region6: #{tpu_custom_call.1} parent=1 // loop_footer
      %s21 = sadd.s32 1, %s17
    $region7: #{tpu_custom_call.1} parent=1 // loop_footer_branch
      %16 = sbr.rel target = $region3
    $region8: #{tpu_custom_call.1} parent=1 // loop_exit
      _
    %1670 = vsyncpa [#allocation8], 1
    %s1671 = scalar_lea.sflag [#allocation8], 1
    %1672 = vsyncpa %s1671, 1
    %1673 = vsyncpa [#allocation9], 1
    %s1674 = scalar_lea.sflag [#allocation9], 1
    %1675 = vsyncpa %s1674, 1
  %1676 = vsyncmov [#allocation3]
  %s1677 = vpop.sfrf %1676
  %p1678 = scmp.eq.s32.totalorder %s1677, 0
  %p1679 = pneg %p1678
  %1681 = shalt.err (%p1679)

</llo_original>
